<compile_context>
chip_gen: v5e
topology: v5e:2x2
jax: 0.10.0
libtpu: 0.0.40
codegen_flags: <defaults>
</compile_context>

<pallas_src>
import functools

import jax
import jax.numpy as jnp
from jax.experimental import pallas as pl
from jax.experimental.pallas import tpu as pltpu


def _round_up(v, m):
    return -(-v // m) * m


def _padded_vmem_bytes(shape, itemsize):
    """Rough upper bound on the VMEM footprint of one buffer of `shape`."""
    sub = 8 if itemsize >= 4 else (16 if itemsize == 2 else 32)
    lead = 1
    for d in shape[:-2]:
        lead *= d
    return lead * _round_up(shape[-2], sub) * _round_up(shape[-1], 128) * itemsize


def _vmem_capacity_bytes():
    try:
        cap = getattr(pltpu.get_tpu_info(), "vmem_capacity_bytes", None)
        if cap:
            return int(cap)
    except Exception:
        pass
    return 64 * 1024 * 1024  # conservative fallback (v7x per-TensorCore VMEM)


def _deconv_mlp_kernel(xT_ref, w1_ref, b1_ref, w2_ref, b2_ref, w3_ref, b3_ref,
                       o_ref):
    # xT_ref: (iC, TM)        input pixels, pixels on lanes
    # w1_ref: (oC, Hp, iC)    layer-1 weights^T   (VMEM-resident, const index)
    # b1_ref: (oC, Hp, 1) f32 layer-1 biases      (resident)
    # w2_ref: (oC, Hp, Hp)    layer-2 weights^T   (resident)
    # b2_ref: (oC, Hp, 1) f32 layer-2 biases      (resident)
    # w3_ref: (oC, K, Hp)     layer-3 weights^T   (resident)
    # b3_ref: (oC, K, 1)  f32 layer-3 biases      (resident)
    # o_ref:  (oC, K, TM) f32 output tile, pixels on lanes (lane-dense stores)
    x = xT_ref[...]                                    # (iC, TM), read once
    oC = o_ref.shape[0]
    for c in range(oC):                                # static unroll, oC small
        h1 = jnp.dot(w1_ref[c], x, preferred_element_type=jnp.float32)
        h1 = jnp.maximum(h1 + b1_ref[c], 0.0).astype(x.dtype)      # (Hp, TM)
        h2 = jnp.dot(w2_ref[c], h1, preferred_element_type=jnp.float32)
        h2 = jnp.maximum(h2 + b2_ref[c], 0.0).astype(x.dtype)      # (Hp, TM)
        h3 = jnp.dot(w3_ref[c], h2, preferred_element_type=jnp.float32)
        o_ref[c] = (h3 + b3_ref[c]).astype(o_ref.dtype)            # (K, TM)


def deconv2d_pallas(x, params, kernel_size, *, tm=2048,
                    compute_dtype=jnp.bfloat16):
    """x: (n, iC, iH, iW) float32 NCHW. Returns (n, oC, kH*iH, kW*iW) float32."""
    n, iC, iH, iW = x.shape
    kH, kW = kernel_size
    W1, b1, W2, b2, W3, b3 = params
    oC, _, H = W1.shape
    K = kH * kW
    M = n * iH * iW

    # Zero-pad the hidden dim up to the next multiple of 128 (exact: padded
    # units are relu(0 + 0) = 0 and their outgoing weights are 0).  Never pad
    # further than that (review: do not pad to 256 to "fill" the MXU).
    Hp = max(128, _round_up(H, 128))
    dH = Hp - H
    if dH:
        W1 = jnp.pad(W1, ((0, 0), (0, 0), (0, dH)))
        b1 = jnp.pad(b1, ((0, 0), (0, 0), (0, dH)))
        W2 = jnp.pad(W2, ((0, 0), (0, dH), (0, dH)))
        b2 = jnp.pad(b2, ((0, 0), (0, 0), (0, dH)))
        W3 = jnp.pad(W3, ((0, 0), (0, dH), (0, 0)))

    # --- Generation-aware tile-size selection (real VMEM accounting) --------
    cap = _vmem_capacity_bytes()
    budget = int(cap * 0.55)              # ~35 MiB on v7x, ~70 MiB on v5e/v6e

    weight_shapes = [((oC, Hp, iC), 2), ((oC, Hp, 1), 4),
                     ((oC, Hp, Hp), 2), ((oC, Hp, 1), 4),
                     ((oC, K, Hp), 2), ((oC, K, 1), 4)]
    weight_bytes = sum(_padded_vmem_bytes(s, b) for s, b in weight_shapes)

    def tile_bytes(tm_):
        xb = _padded_vmem_bytes((iC, tm_), 2)      # x block
        ob = _padded_vmem_bytes((oC, K, tm_), 4)   # output block
        tmp = 4 * Hp * tm_ * 4                     # f32/bf16 intermediates
        return 2 * (xb + ob) + tmp                 # x/out are double-buffered

    tm = max(128, (tm // 128) * 128)
    TM = max(128, min(tm, _round_up(M, 128)))
    while TM > 128 and 2 * weight_bytes + tile_bytes(TM) > budget:
        TM = max(128, ((TM // 2) // 128) * 128)    # stay a multiple of 128

    num_m = -(-M // TM)
    # Prefer an even tile count so v7x's two TensorCores stay balanced on the
    # "parallel" m axis (harmless on single-core v5e/v6e).
    if num_m % 2 == 1:
        cand = _round_up(-(-M // (num_m + 1)), 128)
        if (cand >= 128 and -(-M // cand) % 2 == 0
                and 2 * weight_bytes + tile_bytes(cand) <= budget):
            TM = cand
            num_m = -(-M // TM)
    Mp = num_m * TM

    need = 2 * weight_bytes + tile_bytes(TM) + (4 << 20)
    vmem_limit = int(min(cap - (8 << 20), max(32 << 20, need)))

    # --- Operand layout: pixels on lanes everywhere -------------------------
    xT = jnp.transpose(x, (1, 0, 2, 3)).reshape(iC, M)            # (iC, M)
    if Mp != M:
        xT = jnp.pad(xT, ((0, 0), (0, Mp - M)))
    xT = xT.astype(compute_dtype)

    w1T = jnp.transpose(W1, (0, 2, 1)).astype(compute_dtype)      # (oC, Hp, iC)
    b1T = jnp.transpose(b1, (0, 2, 1)).astype(jnp.float32)        # (oC, Hp, 1)
    w2T = jnp.transpose(W2, (0, 2, 1)).astype(compute_dtype)      # (oC, Hp, Hp)
    b2T = jnp.transpose(b2, (0, 2, 1)).astype(jnp.float32)        # (oC, Hp, 1)
    w3T = jnp.transpose(W3, (0, 2, 1)).astype(compute_dtype)      # (oC, K, Hp)
    b3T = jnp.transpose(b3, (0, 2, 1)).astype(jnp.float32)        # (oC, K, 1)

    out = pl.pallas_call(
        _deconv_mlp_kernel,
        out_shape=jax.ShapeDtypeStruct((oC, K, Mp), jnp.float32),
        grid_spec=pltpu.PrefetchScalarGridSpec(
            num_scalar_prefetch=0,
            grid=(num_m,),                             # one step per pixel tile
            in_specs=[
                pl.BlockSpec((iC, TM), lambda m: (0, m)),          # x tile
                pl.BlockSpec((oC, Hp, iC), lambda m: (0, 0, 0)),   # W1 (resident)
                pl.BlockSpec((oC, Hp, 1), lambda m: (0, 0, 0)),    # b1 (resident)
                pl.BlockSpec((oC, Hp, Hp), lambda m: (0, 0, 0)),   # W2 (resident)
                pl.BlockSpec((oC, Hp, 1), lambda m: (0, 0, 0)),    # b2 (resident)
                pl.BlockSpec((oC, K, Hp), lambda m: (0, 0, 0)),    # W3 (resident)
                pl.BlockSpec((oC, K, 1), lambda m: (0, 0, 0)),     # b3 (resident)
            ],
            out_specs=pl.BlockSpec((oC, K, TM), lambda m: (0, 0, m)),
        ),
        compiler_params=pltpu.CompilerParams(
            dimension_semantics=("parallel",),
            vmem_limit_bytes=vmem_limit,
        ),
    )(xT, w1T, b1T, w2T, b2T, w3T, b3T)

    # (oC, K, M) -> NCHW-like output, matching the PyTorch scatter:
    # out[c, kh*kW+kw, b*iH*iW+ih*iW+iw] -> result[b, c, ih*kH+kh, iw*kW+kw]
    out = out[:, :, :M]
    out = out.reshape(oC, kH, kW, n, iH, iW)
    out = jnp.transpose(out, (3, 0, 4, 1, 5, 2))
    return out.reshape(n, oC, kH * iH, kW * iW)


def init_params(key, in_channels, out_channels, kernel_size, hidden_size):
    kH, kW = kernel_size
    K = kH * kW
    keys = jax.random.split(key, 6)

    def lin_init(kw, kb, fan_in, shape_w, shape_b):
        bound = 1.0 / jnp.sqrt(fan_in)
        w = jax.random.uniform(kw, shape_w, jnp.float32, -bound, bound)
        b = jax.random.uniform(kb, shape_b, jnp.float32, -bound, bound)
        return w, b

    W1, b1 = lin_init(keys[0], keys[1], in_channels,
                      (out_channels, in_channels, hidden_size),
                      (out_channels, 1, hidden_size))
    W2, b2 = lin_init(keys[2], keys[3], hidden_size,
                      (out_channels, hidden_size, hidden_size),
                      (out_channels, 1, hidden_size))
    W3, b3 = lin_init(keys[4], keys[5], hidden_size,
                      (out_channels, hidden_size, K),
                      (out_channels, 1, K))
    return (W1, b1, W2, b2, W3, b3)


def deconv2d_reference(x, params, kernel_size):
    """Pure-JAX f32 reference mirroring the PyTorch forward."""
    n, iC, iH, iW = x.shape
    kH, kW = kernel_size
    W1, b1, W2, b2, W3, b3 = params
    oC = W1.shape[0]
    x2d = jnp.transpose(x, (0, 2, 3, 1)).reshape(-1, iC)
    outs = []
    for i in range(oC):
        h = jnp.maximum(x2d @ W1[i] + b1[i], 0.0)
        h = jnp.maximum(h @ W2[i] + b2[i], 0.0)
        h = h @ W3[i] + b3[i]
        aligned = h.reshape(n, iH, iW, kH, kW)
        outs.append(jnp.transpose(aligned, (0, 1, 3, 2, 4)).reshape(
            n, kH * iH, kW * iW))
    return jnp.transpose(jnp.stack(outs), (1, 0, 2, 3))


if __name__ == "__main__":
    # Small, deterministic config consistent with the module.
    n, iC, iH, iW = 2, 4, 16, 16
    oC = 3
    kernel_size = (2, 2)
    hidden = 32

    key = jax.random.PRNGKey(0)
    kx, kp = jax.random.split(key)
    x = jax.random.normal(kx, (n, iC, iH, iW), jnp.float32)
    params = init_params(kp, iC, oC, kernel_size, hidden)

    # Default tm=2048; M=512 is split into 2 even pixel tiles (exercises the
    # tiled grid, resident weights and the per-tile channel loop).
    fwd = jax.jit(functools.partial(deconv2d_pallas, kernel_size=kernel_size))
    out = jax.block_until_ready(fwd(x, params))

    ref = deconv2d_reference(x, params, kernel_size)
    assert out.shape == (n, oC, kernel_size[0] * iH, kernel_size[1] * iW)
    # Matmul operands are bf16 (f32 accumulation), so compare against the f32
    # reference at bf16-level tolerance.
    assert jnp.allclose(out, ref, atol=5e-2, rtol=5e-2), "mismatch vs reference"
    print("KERNEL_OK")
</pallas_src>

<mosaic_0001>
module attributes {stable_mosaic.version = 11 : i64} {
  func.func @_deconv_mlp_kernel(%arg0: i32, %arg1: memref<4x256xbf16, #tpu.memory_space<vmem>>, %arg2: memref<3x128x4xbf16, #tpu.memory_space<vmem>>, %arg3: memref<3x128x1xf32, #tpu.memory_space<vmem>>, %arg4: memref<3x128x128xbf16, #tpu.memory_space<vmem>>, %arg5: memref<3x128x1xf32, #tpu.memory_space<vmem>>, %arg6: memref<3x4x128xbf16, #tpu.memory_space<vmem>>, %arg7: memref<3x4x1xf32, #tpu.memory_space<vmem>>, %arg8: memref<3x4x256xf32, #tpu.memory_space<vmem>>) attributes {dimension_semantics = [#tpu.dimension_semantics<parallel>], iteration_bounds = array<i64: 2>, scalar_prefetch = 0 : i64, scratch_operands = 0 : i64, tpu.core_type = #tpu.core_type<tc>, window_params = [{transform_indices = @transform_0, window_bounds = array<i64: 4, 256>}, {pipeline_mode = #tpu.pipeline_mode<synchronous>, transform_indices = @transform_1, window_bounds = array<i64: 3, 128, 4>}, {pipeline_mode = #tpu.pipeline_mode<synchronous>, transform_indices = @transform_2, window_bounds = array<i64: 3, 128, 1>}, {pipeline_mode = #tpu.pipeline_mode<synchronous>, transform_indices = @transform_3, window_bounds = array<i64: 3, 128, 128>}, {pipeline_mode = #tpu.pipeline_mode<synchronous>, transform_indices = @transform_4, window_bounds = array<i64: 3, 128, 1>}, {pipeline_mode = #tpu.pipeline_mode<synchronous>, transform_indices = @transform_5, window_bounds = array<i64: 3, 4, 128>}, {pipeline_mode = #tpu.pipeline_mode<synchronous>, transform_indices = @transform_6, window_bounds = array<i64: 3, 4, 1>}, {transform_indices = @transform_7, window_bounds = array<i64: 3, 4, 256>}]} {
    %c0 = arith.constant 0 : index
    %c0_0 = arith.constant 0 : index
    %0 = vector.load %arg1[%c0, %c0_0] : memref<4x256xbf16, #tpu.memory_space<vmem>>, vector<4x256xbf16>
    %c0_1 = arith.constant 0 : index
    %c0_2 = arith.constant 0 : index
    %c0_3 = arith.constant 0 : index
    %1 = vector.load %arg2[%c0_1, %c0_2, %c0_3] : memref<3x128x4xbf16, #tpu.memory_space<vmem>>, vector<1x128x4xbf16>
    %2 = vector.shape_cast %1 : vector<1x128x4xbf16> to vector<128x4xbf16>
    %cst = arith.constant dense<0.000000e+00> : vector<128x256xf32>
    %3 = tpu.matmul %2, %0, %cst {dimension_numbers = #tpu.dot_dimension_numbers<[1], [0], [0], [1], [0, 0, 1, 1], [], []>} : vector<128x4xbf16>, vector<4x256xbf16>, vector<128x256xf32> -> vector<128x256xf32>
    %c0_4 = arith.constant 0 : index
    %c0_5 = arith.constant 0 : index
    %c0_6 = arith.constant 0 : index
    %4 = vector.load %arg3[%c0_4, %c0_5, %c0_6] : memref<3x128x1xf32, #tpu.memory_space<vmem>>, vector<1x128x1xf32>
    %5 = vector.shape_cast %4 : vector<1x128x1xf32> to vector<128x1xf32>
    %6 = vector.broadcast %5 : vector<128x1xf32> to vector<128x256xf32>
    %7 = arith.addf %3, %6 : vector<128x256xf32>
    %cst_7 = arith.constant 0.000000e+00 : f32
    %8 = vector.broadcast %cst_7 : f32 to vector<128x256xf32>
    %9 = arith.maximumf %7, %8 : vector<128x256xf32>
    %10 = arith.truncf %9 : vector<128x256xf32> to vector<128x256xbf16>
    %c0_8 = arith.constant 0 : index
    %c0_9 = arith.constant 0 : index
    %c0_10 = arith.constant 0 : index
    %11 = vector.load %arg4[%c0_8, %c0_9, %c0_10] : memref<3x128x128xbf16, #tpu.memory_space<vmem>>, vector<1x128x128xbf16>
    %12 = vector.shape_cast %11 : vector<1x128x128xbf16> to vector<128x128xbf16>
    %cst_11 = arith.constant dense<0.000000e+00> : vector<128x256xf32>
    %13 = tpu.matmul %12, %10, %cst_11 {dimension_numbers = #tpu.dot_dimension_numbers<[1], [0], [0], [1], [0, 0, 1, 1], [], []>} : vector<128x128xbf16>, vector<128x256xbf16>, vector<128x256xf32> -> vector<128x256xf32>
    %c0_12 = arith.constant 0 : index
    %c0_13 = arith.constant 0 : index
    %c0_14 = arith.constant 0 : index
    %14 = vector.load %arg5[%c0_12, %c0_13, %c0_14] : memref<3x128x1xf32, #tpu.memory_space<vmem>>, vector<1x128x1xf32>
    %15 = vector.shape_cast %14 : vector<1x128x1xf32> to vector<128x1xf32>
    %16 = vector.broadcast %15 : vector<128x1xf32> to vector<128x256xf32>
    %17 = arith.addf %13, %16 : vector<128x256xf32>
    %cst_15 = arith.constant 0.000000e+00 : f32
    %18 = vector.broadcast %cst_15 : f32 to vector<128x256xf32>
    %19 = arith.maximumf %17, %18 : vector<128x256xf32>
    %20 = arith.truncf %19 : vector<128x256xf32> to vector<128x256xbf16>
    %c0_16 = arith.constant 0 : index
    %c0_17 = arith.constant 0 : index
    %c0_18 = arith.constant 0 : index
    %21 = vector.load %arg6[%c0_16, %c0_17, %c0_18] : memref<3x4x128xbf16, #tpu.memory_space<vmem>>, vector<1x4x128xbf16>
    %22 = vector.shape_cast %21 : vector<1x4x128xbf16> to vector<4x128xbf16>
    %cst_19 = arith.constant dense<0.000000e+00> : vector<4x256xf32>
    %23 = tpu.matmul %22, %20, %cst_19 {dimension_numbers = #tpu.dot_dimension_numbers<[1], [0], [0], [1], [0, 0, 1, 1], [], []>} : vector<4x128xbf16>, vector<128x256xbf16>, vector<4x256xf32> -> vector<4x256xf32>
    %c0_20 = arith.constant 0 : index
    %c0_21 = arith.constant 0 : index
    %c0_22 = arith.constant 0 : index
    %24 = vector.load %arg7[%c0_20, %c0_21, %c0_22] : memref<3x4x1xf32, #tpu.memory_space<vmem>>, vector<1x4x1xf32>
    %25 = vector.shape_cast %24 : vector<1x4x1xf32> to vector<4x1xf32>
    %26 = vector.broadcast %25 : vector<4x1xf32> to vector<4x256xf32>
    %27 = arith.addf %23, %26 : vector<4x256xf32>
    %c0_23 = arith.constant 0 : index
    %c0_24 = arith.constant 0 : index
    %c0_25 = arith.constant 0 : index
    %28 = vector.load %arg8[%c0_23, %c0_24, %c0_25] : memref<3x4x256xf32, #tpu.memory_space<vmem>>, vector<1x4x256xf32>
    %29 = vector.shape_cast %28 : vector<1x4x256xf32> to vector<4x256xf32>
    %30 = vector.shape_cast %27 : vector<4x256xf32> to vector<1x4x256xf32>
    tpu.vector_store %arg8[%c0_23, %c0_24, %c0_25], %30 {strides = array<i32>} : memref<3x4x256xf32, #tpu.memory_space<vmem>>, vector<1x4x256xf32>,
    %c1 = arith.constant 1 : index
    %c0_26 = arith.constant 0 : index
    %c0_27 = arith.constant 0 : index
    %31 = vector.load %arg2[%c1, %c0_26, %c0_27] : memref<3x128x4xbf16, #tpu.memory_space<vmem>>, vector<1x128x4xbf16>
    %32 = vector.shape_cast %31 : vector<1x128x4xbf16> to vector<128x4xbf16>
    %cst_28 = arith.constant dense<0.000000e+00> : vector<128x256xf32>
    %33 = tpu.matmul %32, %0, %cst_28 {dimension_numbers = #tpu.dot_dimension_numbers<[1], [0], [0], [1], [0, 0, 1, 1], [], []>} : vector<128x4xbf16>, vector<4x256xbf16>, vector<128x256xf32> -> vector<128x256xf32>
    %c1_29 = arith.constant 1 : index
    %c0_30 = arith.constant 0 : index
    %c0_31 = arith.constant 0 : index
    %34 = vector.load %arg3[%c1_29, %c0_30, %c0_31] : memref<3x128x1xf32, #tpu.memory_space<vmem>>, vector<1x128x1xf32>
    %35 = vector.shape_cast %34 : vector<1x128x1xf32> to vector<128x1xf32>
    %36 = vector.broadcast %35 : vector<128x1xf32> to vector<128x256xf32>
    %37 = arith.addf %33, %36 : vector<128x256xf32>
    %cst_32 = arith.constant 0.000000e+00 : f32
    %38 = vector.broadcast %cst_32 : f32 to vector<128x256xf32>
    %39 = arith.maximumf %37, %38 : vector<128x256xf32>
    %40 = arith.truncf %39 : vector<128x256xf32> to vector<128x256xbf16>
    %c1_33 = arith.constant 1 : index
    %c0_34 = arith.constant 0 : index
    %c0_35 = arith.constant 0 : index
    %41 = vector.load %arg4[%c1_33, %c0_34, %c0_35] : memref<3x128x128xbf16, #tpu.memory_space<vmem>>, vector<1x128x128xbf16>
    %42 = vector.shape_cast %41 : vector<1x128x128xbf16> to vector<128x128xbf16>
    %cst_36 = arith.constant dense<0.000000e+00> : vector<128x256xf32>
    %43 = tpu.matmul %42, %40, %cst_36 {dimension_numbers = #tpu.dot_dimension_numbers<[1], [0], [0], [1], [0, 0, 1, 1], [], []>} : vector<128x128xbf16>, vector<128x256xbf16>, vector<128x256xf32> -> vector<128x256xf32>
    %c1_37 = arith.constant 1 : index
    %c0_38 = arith.constant 0 : index
    %c0_39 = arith.constant 0 : index
    %44 = vector.load %arg5[%c1_37, %c0_38, %c0_39] : memref<3x128x1xf32, #tpu.memory_space<vmem>>, vector<1x128x1xf32>
    %45 = vector.shape_cast %44 : vector<1x128x1xf32> to vector<128x1xf32>
    %46 = vector.broadcast %45 : vector<128x1xf32> to vector<128x256xf32>
    %47 = arith.addf %43, %46 : vector<128x256xf32>
    %cst_40 = arith.constant 0.000000e+00 : f32
    %48 = vector.broadcast %cst_40 : f32 to vector<128x256xf32>
    %49 = arith.maximumf %47, %48 : vector<128x256xf32>
    %50 = arith.truncf %49 : vector<128x256xf32> to vector<128x256xbf16>
    %c1_41 = arith.constant 1 : index
    %c0_42 = arith.constant 0 : index
    %c0_43 = arith.constant 0 : index
    %51 = vector.load %arg6[%c1_41, %c0_42, %c0_43] : memref<3x4x128xbf16, #tpu.memory_space<vmem>>, vector<1x4x128xbf16>
    %52 = vector.shape_cast %51 : vector<1x4x128xbf16> to vector<4x128xbf16>
    %cst_44 = arith.constant dense<0.000000e+00> : vector<4x256xf32>
    %53 = tpu.matmul %52, %50, %cst_44 {dimension_numbers = #tpu.dot_dimension_numbers<[1], [0], [0], [1], [0, 0, 1, 1], [], []>} : vector<4x128xbf16>, vector<128x256xbf16>, vector<4x256xf32> -> vector<4x256xf32>
    %c1_45 = arith.constant 1 : index
    %c0_46 = arith.constant 0 : index
    %c0_47 = arith.constant 0 : index
    %54 = vector.load %arg7[%c1_45, %c0_46, %c0_47] : memref<3x4x1xf32, #tpu.memory_space<vmem>>, vector<1x4x1xf32>
    %55 = vector.shape_cast %54 : vector<1x4x1xf32> to vector<4x1xf32>
    %56 = vector.broadcast %55 : vector<4x1xf32> to vector<4x256xf32>
    %57 = arith.addf %53, %56 : vector<4x256xf32>
    %c1_48 = arith.constant 1 : index
    %c0_49 = arith.constant 0 : index
    %c0_50 = arith.constant 0 : index
    %58 = vector.load %arg8[%c1_48, %c0_49, %c0_50] : memref<3x4x256xf32, #tpu.memory_space<vmem>>, vector<1x4x256xf32>
    %59 = vector.shape_cast %58 : vector<1x4x256xf32> to vector<4x256xf32>
    %60 = vector.shape_cast %57 : vector<4x256xf32> to vector<1x4x256xf32>
    tpu.vector_store %arg8[%c1_48, %c0_49, %c0_50], %60 {strides = array<i32>} : memref<3x4x256xf32, #tpu.memory_space<vmem>>, vector<1x4x256xf32>,
    %c2 = arith.constant 2 : index
    %c0_51 = arith.constant 0 : index
    %c0_52 = arith.constant 0 : index
    %61 = vector.load %arg2[%c2, %c0_51, %c0_52] : memref<3x128x4xbf16, #tpu.memory_space<vmem>>, vector<1x128x4xbf16>
    %62 = vector.shape_cast %61 : vector<1x128x4xbf16> to vector<128x4xbf16>
    %cst_53 = arith.constant dense<0.000000e+00> : vector<128x256xf32>
    %63 = tpu.matmul %62, %0, %cst_53 {dimension_numbers = #tpu.dot_dimension_numbers<[1], [0], [0], [1], [0, 0, 1, 1], [], []>} : vector<128x4xbf16>, vector<4x256xbf16>, vector<128x256xf32> -> vector<128x256xf32>
    %c2_54 = arith.constant 2 : index
    %c0_55 = arith.constant 0 : index
    %c0_56 = arith.constant 0 : index
    %64 = vector.load %arg3[%c2_54, %c0_55, %c0_56] : memref<3x128x1xf32, #tpu.memory_space<vmem>>, vector<1x128x1xf32>
    %65 = vector.shape_cast %64 : vector<1x128x1xf32> to vector<128x1xf32>
    %66 = vector.broadcast %65 : vector<128x1xf32> to vector<128x256xf32>
    %67 = arith.addf %63, %66 : vector<128x256xf32>
    %cst_57 = arith.constant 0.000000e+00 : f32
    %68 = vector.broadcast %cst_57 : f32 to vector<128x256xf32>
    %69 = arith.maximumf %67, %68 : vector<128x256xf32>
    %70 = arith.truncf %69 : vector<128x256xf32> to vector<128x256xbf16>
    %c2_58 = arith.constant 2 : index
    %c0_59 = arith.constant 0 : index
    %c0_60 = arith.constant 0 : index
    %71 = vector.load %arg4[%c2_58, %c0_59, %c0_60] : memref<3x128x128xbf16, #tpu.memory_space<vmem>>, vector<1x128x128xbf16>
    %72 = vector.shape_cast %71 : vector<1x128x128xbf16> to vector<128x128xbf16>
    %cst_61 = arith.constant dense<0.000000e+00> : vector<128x256xf32>
    %73 = tpu.matmul %72, %70, %cst_61 {dimension_numbers = #tpu.dot_dimension_numbers<[1], [0], [0], [1], [0, 0, 1, 1], [], []>} : vector<128x128xbf16>, vector<128x256xbf16>, vector<128x256xf32> -> vector<128x256xf32>
    %c2_62 = arith.constant 2 : index
    %c0_63 = arith.constant 0 : index
    %c0_64 = arith.constant 0 : index
    %74 = vector.load %arg5[%c2_62, %c0_63, %c0_64] : memref<3x128x1xf32, #tpu.memory_space<vmem>>, vector<1x128x1xf32>
    %75 = vector.shape_cast %74 : vector<1x128x1xf32> to vector<128x1xf32>
    %76 = vector.broadcast %75 : vector<128x1xf32> to vector<128x256xf32>
    %77 = arith.addf %73, %76 : vector<128x256xf32>
    %cst_65 = arith.constant 0.000000e+00 : f32
    %78 = vector.broadcast %cst_65 : f32 to vector<128x256xf32>
    %79 = arith.maximumf %77, %78 : vector<128x256xf32>
    %80 = arith.truncf %79 : vector<128x256xf32> to vector<128x256xbf16>
    %c2_66 = arith.constant 2 : index
    %c0_67 = arith.constant 0 : index
    %c0_68 = arith.constant 0 : index
    %81 = vector.load %arg6[%c2_66, %c0_67, %c0_68] : memref<3x4x128xbf16, #tpu.memory_space<vmem>>, vector<1x4x128xbf16>
    %82 = vector.shape_cast %81 : vector<1x4x128xbf16> to vector<4x128xbf16>
    %cst_69 = arith.constant dense<0.000000e+00> : vector<4x256xf32>
    %83 = tpu.matmul %82, %80, %cst_69 {dimension_numbers = #tpu.dot_dimension_numbers<[1], [0], [0], [1], [0, 0, 1, 1], [], []>} : vector<4x128xbf16>, vector<128x256xbf16>, vector<4x256xf32> -> vector<4x256xf32>
    %c2_70 = arith.constant 2 : index
    %c0_71 = arith.constant 0 : index
    %c0_72 = arith.constant 0 : index
    %84 = vector.load %arg7[%c2_70, %c0_71, %c0_72] : memref<3x4x1xf32, #tpu.memory_space<vmem>>, vector<1x4x1xf32>
    %85 = vector.shape_cast %84 : vector<1x4x1xf32> to vector<4x1xf32>
    %86 = vector.broadcast %85 : vector<4x1xf32> to vector<4x256xf32>
    %87 = arith.addf %83, %86 : vector<4x256xf32>
    %c2_73 = arith.constant 2 : index
    %c0_74 = arith.constant 0 : index
    %c0_75 = arith.constant 0 : index
    %88 = vector.load %arg8[%c2_73, %c0_74, %c0_75] : memref<3x4x256xf32, #tpu.memory_space<vmem>>, vector<1x4x256xf32>
    %89 = vector.shape_cast %88 : vector<1x4x256xf32> to vector<4x256xf32>
    %90 = vector.shape_cast %87 : vector<4x256xf32> to vector<1x4x256xf32>
    tpu.vector_store %arg8[%c2_73, %c0_74, %c0_75], %90 {strides = array<i32>} : memref<3x4x256xf32, #tpu.memory_space<vmem>>, vector<1x4x256xf32>,
    return
  }
  func.func @transform_0(%arg0: i32) -> (i32, i32) {
    %c0_i32 = arith.constant 0 : i32
    %c0_i32_0 = arith.constant 0 : i32
    return %c0_i32, %arg0 : i32, i32
  }
  func.func @transform_1(%arg0: i32) -> (i32, i32, i32) {
    %c0_i32 = arith.constant 0 : i32
    %c0_i32_0 = arith.constant 0 : i32
    %c0_i32_1 = arith.constant 0 : i32
    %c0_i32_2 = arith.constant 0 : i32
    return %c0_i32, %c0_i32_0, %c0_i32_1 : i32, i32, i32
  }
  func.func @transform_2(%arg0: i32) -> (i32, i32, i32) {
    %c0_i32 = arith.constant 0 : i32
    %c0_i32_0 = arith.constant 0 : i32
    %c0_i32_1 = arith.constant 0 : i32
    %c0_i32_2 = arith.constant 0 : i32
    return %c0_i32, %c0_i32_0, %c0_i32_1 : i32, i32, i32
  }
  func.func @transform_3(%arg0: i32) -> (i32, i32, i32) {
    %c0_i32 = arith.constant 0 : i32
    %c0_i32_0 = arith.constant 0 : i32
    %c0_i32_1 = arith.constant 0 : i32
    %c0_i32_2 = arith.constant 0 : i32
    return %c0_i32, %c0_i32_0, %c0_i32_1 : i32, i32, i32
  }
  func.func @transform_4(%arg0: i32) -> (i32, i32, i32) {
    %c0_i32 = arith.constant 0 : i32
    %c0_i32_0 = arith.constant 0 : i32
    %c0_i32_1 = arith.constant 0 : i32
    %c0_i32_2 = arith.constant 0 : i32
    return %c0_i32, %c0_i32_0, %c0_i32_1 : i32, i32, i32
  }
  func.func @transform_5(%arg0: i32) -> (i32, i32, i32) {
    %c0_i32 = arith.constant 0 : i32
    %c0_i32_0 = arith.constant 0 : i32
    %c0_i32_1 = arith.constant 0 : i32
    %c0_i32_2 = arith.constant 0 : i32
    return %c0_i32, %c0_i32_0, %c0_i32_1 : i32, i32, i32
  }
  func.func @transform_6(%arg0: i32) -> (i32, i32, i32) {
    %c0_i32 = arith.constant 0 : i32
    %c0_i32_0 = arith.constant 0 : i32
    %c0_i32_1 = arith.constant 0 : i32
    %c0_i32_2 = arith.constant 0 : i32
    return %c0_i32, %c0_i32_0, %c0_i32_1 : i32, i32, i32
  }
  func.func @transform_7(%arg0: i32) -> (i32, i32, i32) {
    %c0_i32 = arith.constant 0 : i32
    %c0_i32_0 = arith.constant 0 : i32
    %c0_i32_1 = arith.constant 0 : i32
    return %c0_i32, %c0_i32_0, %arg0 : i32, i32, i32
  }
}

</mosaic_0001>

<llo_original>
// kernel: deconv2d_pallas.1
$region0: #{deconv2d_pallas.1}
  #allocation0 [shape = 'u32[]', space=smem, size = 0x4, offset = 0x4, fixed_abs, tag = 'smem constant byte address 0x4 - core index']
  #allocation1 [shape = 'u32[72,128]{1,0:T(1,128)}', space=vmem, size = 0x9000, scoped, tag = 'internal scratch']
  %s0 = inlined_call_operand.vmem [shape: bf16[4,512], index: 0, kind: input, shape index: {}]
  %s1 = inlined_call_operand.vmem [shape: bf16[3,128,4], index: 1, kind: input, shape index: {}]
  %s2 = inlined_call_operand.vmem [shape: f32[3,128,1], index: 2, kind: input, shape index: {}]
  %s3 = inlined_call_operand.vmem [shape: bf16[3,128,128], index: 3, kind: input, shape index: {}]
  %s4 = inlined_call_operand.vmem [shape: f32[3,128,1], index: 4, kind: input, shape index: {}]
  %s5 = inlined_call_operand.vmem [shape: bf16[3,4,128], index: 5, kind: input, shape index: {}]
  %s6 = inlined_call_operand.vmem [shape: f32[3,4,1], index: 6, kind: input, shape index: {}]
  %s7 = inlined_call_operand.vmem [shape: f32[3,4,512], index: 7, kind: output, shape index: {}]
  %s8 = sld [smem:[#allocation0]]
  $region95: #{deconv2d_pallas.1} parent=0
    _
  %s10 = ssub.s32 1, %s8
  %s11 = scalar_select 0, %s10, %s8
  $region1: #{deconv2d_pallas.1} parent=0
    #allocation2 [shape = 'u8[24576]{0}', space=vmem, size = 0x6000, scoped, tag = 'output window, operand 0']
    loop: start=0, step=1, limit=4
    $region2: #{deconv2d_pallas.1} parent=1 // loop_pre_header
      _
    $region3: #{deconv2d_pallas.1} parent=1 // loop_header
      %s13 = sphi 0, %s17
      %p14 = scmp.ge.s32.totalorder %s13, 4
      %s23 = sphi 0, %s25
      %s26 = sphi 0, %s23
      %s27 = sphi 0, %s26
      %s43 = sphi 0, %s27
      %s47 = sphi 0, %s47
      %s49 = sphi 0, %s47
      %s50 = sphi 0, %s49
      %s64 = sphi 0, %s50
      %s68 = sphi 0, %s68
      %s70 = sphi 0, %s68
      %s71 = sphi 0, %s70
      %s85 = sphi 0, %s71
      %s89 = sphi 0, %s89
      %s91 = sphi 0, %s89
      %s92 = sphi 0, %s91
      %s106 = sphi 0, %s92
      %s110 = sphi 0, %s110
      %s112 = sphi 0, %s110
      %s113 = sphi 0, %s112
      %s127 = sphi 0, %s113
      %s131 = sphi 0, %s131
      %s133 = sphi 0, %s131
      %s134 = sphi 0, %s133
      %s148 = sphi 0, %s134
      %s152 = sphi 0, %s152
      %s154 = sphi 0, %s152
      %s155 = sphi 0, %s154
      %s169 = sphi 0, %s155
      %s175 = sphi 0, %s177
      %s178 = sphi 0, %s175
      %s179 = sphi 0, %s178
      %s195 = sphi 0, %s179
    $region4: #{deconv2d_pallas.1} parent=1 // loop_header_branch
      %16 = sbr.rel (%p14) target = $region8
    $region5: #{deconv2d_pallas.1} parent=1 // loop_body
      %s18 = ssub.s32 %s13, 1
      %s19 = ssub.s32 %s13, 2
      %s20 = sadd.s32 %s13, 1
      %s21 = ssub.s32 %s13, %s20
      %p22 = scmp.eq.s32.totalorder %s21, 0
      %s24 = sadd.s32 %s23, 1
      %s25 = scalar_select %p22, %s23, %s24
      %p28 = pneg %p22
      %p29 = scmp.eq.s32.totalorder %s13, 1
      %p30 = por %p28, %p29
      %p31 = scmp.ne.s32.totalorder %s23, %s26
      %p32 = scmp.eq.s32.totalorder %s13, 0
      %p33 = por %p31, %p32
      %p34 = scmp.ne.s32.totalorder %s23, %s26
      %p35 = scmp.eq.s32.totalorder %s18, 1
      %p36 = por %p34, %p35
      %p37 = scmp.ne.s32.totalorder %s26, %s27
      %p38 = scmp.eq.s32.totalorder %s18, 0
      %p39 = por %p37, %p38
      %p40 = scmp.ne.s32.totalorder %s26, %s27
      %p41 = scmp.eq.s32.totalorder %s19, 1
      %p42 = por %p40, %p41
      %p44 = scmp.ne.s32.totalorder %s27, %s43
      %p45 = scmp.eq.s32.totalorder %s19, 0
      %p46 = por %p44, %p45
      %s48 = sadd.s32 %s47, 1
      %p51 = scmp.eq.s32.totalorder %s13, 1
      %p52 = scmp.ne.s32.totalorder %s47, %s49
      %p53 = scmp.eq.s32.totalorder %s13, 0
      %p54 = por %p52, %p53
      %p55 = scmp.ne.s32.totalorder %s47, %s49
      %p56 = scmp.eq.s32.totalorder %s18, 1
      %p57 = por %p55, %p56
      %p58 = scmp.ne.s32.totalorder %s49, %s50
      %p59 = scmp.eq.s32.totalorder %s18, 0
      %p60 = por %p58, %p59
      %p61 = scmp.ne.s32.totalorder %s49, %s50
      %p62 = scmp.eq.s32.totalorder %s19, 1
      %p63 = por %p61, %p62
      %p65 = scmp.ne.s32.totalorder %s50, %s64
      %p66 = scmp.eq.s32.totalorder %s19, 0
      %p67 = por %p65, %p66
      %s69 = sadd.s32 %s68, 1
      %p72 = scmp.eq.s32.totalorder %s13, 1
      %p73 = scmp.ne.s32.totalorder %s68, %s70
      %p74 = scmp.eq.s32.totalorder %s13, 0
      %p75 = por %p73, %p74
      %p76 = scmp.ne.s32.totalorder %s68, %s70
      %p77 = scmp.eq.s32.totalorder %s18, 1
      %p78 = por %p76, %p77
      %p79 = scmp.ne.s32.totalorder %s70, %s71
      %p80 = scmp.eq.s32.totalorder %s18, 0
      %p81 = por %p79, %p80
      %p82 = scmp.ne.s32.totalorder %s70, %s71
      %p83 = scmp.eq.s32.totalorder %s19, 1
      %p84 = por %p82, %p83
      %p86 = scmp.ne.s32.totalorder %s71, %s85
      %p87 = scmp.eq.s32.totalorder %s19, 0
      %p88 = por %p86, %p87
      %s90 = sadd.s32 %s89, 1
      %p93 = scmp.eq.s32.totalorder %s13, 1
      %p94 = scmp.ne.s32.totalorder %s89, %s91
      %p95 = scmp.eq.s32.totalorder %s13, 0
      %p96 = por %p94, %p95
      %p97 = scmp.ne.s32.totalorder %s89, %s91
      %p98 = scmp.eq.s32.totalorder %s18, 1
      %p99 = por %p97, %p98
      %p100 = scmp.ne.s32.totalorder %s91, %s92
      %p101 = scmp.eq.s32.totalorder %s18, 0
      %p102 = por %p100, %p101
      %p103 = scmp.ne.s32.totalorder %s91, %s92
      %p104 = scmp.eq.s32.totalorder %s19, 1
      %p105 = por %p103, %p104
      %p107 = scmp.ne.s32.totalorder %s92, %s106
      %p108 = scmp.eq.s32.totalorder %s19, 0
      %p109 = por %p107, %p108
      %s111 = sadd.s32 %s110, 1
      %p114 = scmp.eq.s32.totalorder %s13, 1
      %p115 = scmp.ne.s32.totalorder %s110, %s112
      %p116 = scmp.eq.s32.totalorder %s13, 0
      %p117 = por %p115, %p116
      %p118 = scmp.ne.s32.totalorder %s110, %s112
      %p119 = scmp.eq.s32.totalorder %s18, 1
      %p120 = por %p118, %p119
      %p121 = scmp.ne.s32.totalorder %s112, %s113
      %p122 = scmp.eq.s32.totalorder %s18, 0
      %p123 = por %p121, %p122
      %p124 = scmp.ne.s32.totalorder %s112, %s113
      %p125 = scmp.eq.s32.totalorder %s19, 1
      %p126 = por %p124, %p125
      %p128 = scmp.ne.s32.totalorder %s113, %s127
      %p129 = scmp.eq.s32.totalorder %s19, 0
      %p130 = por %p128, %p129
      %s132 = sadd.s32 %s131, 1
      %p135 = scmp.eq.s32.totalorder %s13, 1
      %p136 = scmp.ne.s32.totalorder %s131, %s133
      %p137 = scmp.eq.s32.totalorder %s13, 0
      %p138 = por %p136, %p137
      %p139 = scmp.ne.s32.totalorder %s131, %s133
      %p140 = scmp.eq.s32.totalorder %s18, 1
      %p141 = por %p139, %p140
      %p142 = scmp.ne.s32.totalorder %s133, %s134
      %p143 = scmp.eq.s32.totalorder %s18, 0
      %p144 = por %p142, %p143
      %p145 = scmp.ne.s32.totalorder %s133, %s134
      %p146 = scmp.eq.s32.totalorder %s19, 1
      %p147 = por %p145, %p146
      %p149 = scmp.ne.s32.totalorder %s134, %s148
      %p150 = scmp.eq.s32.totalorder %s19, 0
      %p151 = por %p149, %p150
      %s153 = sadd.s32 %s152, 1
      %p156 = scmp.eq.s32.totalorder %s13, 1
      %p157 = scmp.ne.s32.totalorder %s152, %s154
      %p158 = scmp.eq.s32.totalorder %s13, 0
      %p159 = por %p157, %p158
      %p160 = scmp.ne.s32.totalorder %s152, %s154
      %p161 = scmp.eq.s32.totalorder %s18, 1
      %p162 = por %p160, %p161
      %p163 = scmp.ne.s32.totalorder %s154, %s155
      %p164 = scmp.eq.s32.totalorder %s18, 0
      %p165 = por %p163, %p164
      %p166 = scmp.ne.s32.totalorder %s154, %s155
      %p167 = scmp.eq.s32.totalorder %s19, 1
      %p168 = por %p166, %p167
      %p170 = scmp.ne.s32.totalorder %s155, %s169
      %p171 = scmp.eq.s32.totalorder %s19, 0
      %p172 = por %p170, %p171
      %s173 = ssub.s32 %s13, %s20
      %p174 = scmp.eq.s32.totalorder %s173, 0
      %s176 = sadd.s32 %s175, 1
      %s177 = scalar_select %p174, %s175, %s176
      %p180 = pneg %p174
      %p181 = scmp.eq.s32.totalorder %s13, 1
      %p182 = por %p180, %p181
      %p183 = scmp.ne.s32.totalorder %s175, %s178
      %p184 = scmp.eq.s32.totalorder %s13, 0
      %p185 = por %p183, %p184
      %p186 = scmp.ne.s32.totalorder %s175, %s178
      %p187 = scmp.eq.s32.totalorder %s18, 1
      %p188 = por %p186, %p187
      %p189 = scmp.ne.s32.totalorder %s178, %s179
      %p190 = scmp.eq.s32.totalorder %s18, 0
      %p191 = por %p189, %p190
      %p192 = scmp.ne.s32.totalorder %s178, %s179
      %p193 = scmp.eq.s32.totalorder %s19, 1
      %p194 = por %p192, %p193
      %p196 = scmp.ne.s32.totalorder %s179, %s195
      %p197 = scmp.eq.s32.totalorder %s19, 0
      %p198 = por %p196, %p197
      %p199 = scmp.le.s32.totalorder 1, %s13
      %p200 = scmp.lt.s32.totalorder %s13, 3
      %p201 = pnand %p199, %p200
      %p202 = pneg %p201
      // Predicated region
      $region9: #{deconv2d_pallas.1} parent=5 // pred_check
        _
      $region10: #{deconv2d_pallas.1} parent=5 // pred_check_branch
        %204 = sbr.rel (%p201) target = $region12
      $region11: #{deconv2d_pallas.1} parent=5 // pred_region
        %s205 = ssub.s32 %s13, 1
        // Predicated region
        $region13: #{deconv2d_pallas.1} parent=11 // pred_check
          %p206 = pneg %p60
        $region14: #{deconv2d_pallas.1} parent=11 // pred_check_branch
          %208 = sbr.rel (%p206) target = $region16
        $region15: #{deconv2d_pallas.1} parent=11 // pred_region
          _
        $region16: #{deconv2d_pallas.1} parent=11 // pred_fallthru
          _
        // Predicated region
        $region17: #{deconv2d_pallas.1} parent=11 // pred_check
          %p209 = pneg %p81
        $region18: #{deconv2d_pallas.1} parent=11 // pred_check_branch
          %211 = sbr.rel (%p209) target = $region20
        $region19: #{deconv2d_pallas.1} parent=11 // pred_region
          _
        $region20: #{deconv2d_pallas.1} parent=11 // pred_fallthru
          _
        // Predicated region
        $region21: #{deconv2d_pallas.1} parent=11 // pred_check
          %p212 = pneg %p102
        $region22: #{deconv2d_pallas.1} parent=11 // pred_check_branch
          %214 = sbr.rel (%p212) target = $region24
        $region23: #{deconv2d_pallas.1} parent=11 // pred_region
          _
        $region24: #{deconv2d_pallas.1} parent=11 // pred_fallthru
          _
        // Predicated region
        $region25: #{deconv2d_pallas.1} parent=11 // pred_check
          %p215 = pneg %p123
        $region26: #{deconv2d_pallas.1} parent=11 // pred_check_branch
          %217 = sbr.rel (%p215) target = $region28
        $region27: #{deconv2d_pallas.1} parent=11 // pred_region
          _
        $region28: #{deconv2d_pallas.1} parent=11 // pred_fallthru
          _
        // Predicated region
        $region29: #{deconv2d_pallas.1} parent=11 // pred_check
          %p218 = pneg %p144
        $region30: #{deconv2d_pallas.1} parent=11 // pred_check_branch
          %220 = sbr.rel (%p218) target = $region32
        $region31: #{deconv2d_pallas.1} parent=11 // pred_region
          _
        $region32: #{deconv2d_pallas.1} parent=11 // pred_fallthru
          _
        // Predicated region
        $region33: #{deconv2d_pallas.1} parent=11 // pred_check
          %p221 = pneg %p165
        $region34: #{deconv2d_pallas.1} parent=11 // pred_check_branch
          %223 = sbr.rel (%p221) target = $region36
        $region35: #{deconv2d_pallas.1} parent=11 // pred_region
          _
        $region36: #{deconv2d_pallas.1} parent=11 // pred_fallthru
          _
      $region12: #{deconv2d_pallas.1} parent=5 // pred_fallthru
        _
      %p224 = scmp.lt.s32.totalorder %s13, 2
      // Predicated region
      $region37: #{deconv2d_pallas.1} parent=5 // pred_check
        %p225 = pneg %p224
      $region38: #{deconv2d_pallas.1} parent=5 // pred_check_branch
        %227 = sbr.rel (%p225) target = $region40
      $region39: #{deconv2d_pallas.1} parent=5 // pred_region
        // Predicated region
        $region41: #{deconv2d_pallas.1} parent=39 // pred_check
          %p228 = pneg %p33
        $region42: #{deconv2d_pallas.1} parent=39 // pred_check_branch
          %230 = sbr.rel (%p228) target = $region44
        $region43: #{deconv2d_pallas.1} parent=39 // pred_region
          %s231 = smul.u32 2, %s13
          %p232 = scmp.lt.s32.totalorder %s231, 3
          %s233 = scalar_select %p232, %s231, 3
          %s234 = smul.addr %s233, 2
          %s235 = scalar_lea.vmem %s0, %s234
          %s236 = smul.u32 2, %s13
        $region44: #{deconv2d_pallas.1} parent=39 // pred_fallthru
          _
      $region40: #{deconv2d_pallas.1} parent=5 // pred_fallthru
        _
      %p237 = scmp.le.s32.totalorder 1, %s13
      %p238 = scmp.lt.s32.totalorder %s13, 3
      %p239 = pnand %p237, %p238
      %p240 = pneg %p239
      // Predicated region
      $region45: #{deconv2d_pallas.1} parent=5 // pred_check
        _
      $region46: #{deconv2d_pallas.1} parent=5 // pred_check_branch
        %242 = sbr.rel (%p239) target = $region48
      $region47: #{deconv2d_pallas.1} parent=5 // pred_region
        %s243 = ssub.s32 %s13, 1
        %s244 = smul.u32 2, %s18
        %p245 = scmp.lt.s32.totalorder %s244, 3
        %s246 = scalar_select %p245, %s244, 3
        %s247 = smul.addr %s246, 2
        %s248 = scalar_lea.vmem %s0, %s247
        %p249 = pneg %p39
        %p250 = pneg %p36
        %p251 = pneg %p60
        %p252 = pneg %p57
        %p253 = pneg %p81
        %p254 = pneg %p78
        %p255 = pneg %p102
        %p256 = pneg %p99
        %p257 = pneg %p123
        %p258 = pneg %p120
        %p259 = pneg %p144
        %p260 = pneg %p141
        %p261 = pneg %p165
        %p262 = pneg %p162
        %p263 = pneg %p191
        %p264 = pneg %p188
        %s265 = sand.u32 %s178, 1
        %s266 = sand.u32 %s178, 1
        %s267 = smul.addr %s266, 24
        %s268 = scalar_lea.vmem [#allocation2], %s267
        %s269 = smul.u32 2, %s18
        %p270 = scmp.lt.s32.totalorder %s269, 3
        %s271 = scalar_select %p270, %s269, 3
        %s272 = smul.addr %s271, 2
        %s273 = scalar_lea.vmem %s0, %s272
        %s274 = smul.u32 2, %s18
        %s275 = smul.u32 2, %s18
        %v277 = vld [vmem:[%s273] sm:$0xf]
        %v278 = vld [vmem:[%s1] sm:$0xf]
        %v279 = vld [vmem:[%s1 + $0x4] sm:$0xf]
        %v280 = vld [vmem:[%s1 + $0x8] sm:$0xf]
        %v281 = vld [vmem:[%s1 + $0xc] sm:$0xf]
        %v282 = vld [vmem:[%s1 + $0x10] sm:$0xf]
        %v283 = vld [vmem:[%s1 + $0x14] sm:$0xf]
        %v284 = vld [vmem:[%s1 + $0x18] sm:$0xf]
        %v285 = vld [vmem:[%s1 + $0x1c] sm:$0xf]
        %v286 = vld [vmem:[%s1 + $0x20] sm:$0xf]
        %v287 = vld [vmem:[%s1 + $0x24] sm:$0xf]
        %v288 = vld [vmem:[%s1 + $0x28] sm:$0xf]
        %v289 = vld [vmem:[%s1 + $0x2c] sm:$0xf]
        %v290 = vld [vmem:[%s1 + $0x30] sm:$0xf]
        %v291 = vld [vmem:[%s1 + $0x34] sm:$0xf]
        %v292 = vld [vmem:[%s1 + $0x38] sm:$0xf]
        %v293 = vld [vmem:[%s1 + $0x3c] sm:$0xf]
        %v294 = vld [vmem:[%s2] sm:$0xff]
        %v295 = vld [vmem:[%s2 + $0x8] sm:$0xff]
        %v296 = vld [vmem:[%s2 + $0x10] sm:$0xff]
        %v297 = vld [vmem:[%s2 + $0x18] sm:$0xff]
        %v298 = vld [vmem:[%s2 + $0x20] sm:$0xff]
        %v299 = vld [vmem:[%s2 + $0x28] sm:$0xff]
        %v300 = vld [vmem:[%s2 + $0x30] sm:$0xff]
        %v301 = vld [vmem:[%s2 + $0x38] sm:$0xff]
        %v302 = vld [vmem:[%s2 + $0x40] sm:$0xff]
        %v303 = vld [vmem:[%s2 + $0x48] sm:$0xff]
        %v304 = vld [vmem:[%s2 + $0x50] sm:$0xff]
        %v305 = vld [vmem:[%s2 + $0x58] sm:$0xff]
        %v306 = vld [vmem:[%s2 + $0x60] sm:$0xff]
        %v307 = vld [vmem:[%s2 + $0x68] sm:$0xff]
        %v308 = vld [vmem:[%s2 + $0x70] sm:$0xff]
        %v309 = vld [vmem:[%s2 + $0x78] sm:$0xff]
        %311 = vset.pattern.permute.xlu0 0
        %312 = vperm.xlu0 %311, %v294
        %v313 = vpop.permute.xlu0 %312
        %316 = vset.pattern.permute.xlu0 0
        %317 = vperm.xlu0 %316, %v295
        %v318 = vpop.permute.xlu0 %317
        %321 = vset.pattern.permute.xlu0 0
        %322 = vperm.xlu0 %321, %v296
        %v323 = vpop.permute.xlu0 %322
        %326 = vset.pattern.permute.xlu0 0
        %327 = vperm.xlu0 %326, %v297
        %v328 = vpop.permute.xlu0 %327
        %331 = vset.pattern.permute.xlu0 0
        %332 = vperm.xlu0 %331, %v298
        %v333 = vpop.permute.xlu0 %332
        %336 = vset.pattern.permute.xlu0 0
        %337 = vperm.xlu0 %336, %v299
        %v338 = vpop.permute.xlu0 %337
        %341 = vset.pattern.permute.xlu0 0
        %342 = vperm.xlu0 %341, %v300
        %v343 = vpop.permute.xlu0 %342
        %346 = vset.pattern.permute.xlu0 0
        %347 = vperm.xlu0 %346, %v301
        %v348 = vpop.permute.xlu0 %347
        %351 = vset.pattern.permute.xlu0 0
        %352 = vperm.xlu0 %351, %v302
        %v353 = vpop.permute.xlu0 %352
        %356 = vset.pattern.permute.xlu0 0
        %357 = vperm.xlu0 %356, %v303
        %v358 = vpop.permute.xlu0 %357
        %361 = vset.pattern.permute.xlu0 0
        %362 = vperm.xlu0 %361, %v304
        %v363 = vpop.permute.xlu0 %362
        %366 = vset.pattern.permute.xlu0 0
        %367 = vperm.xlu0 %366, %v305
        %v368 = vpop.permute.xlu0 %367
        %371 = vset.pattern.permute.xlu0 0
        %372 = vperm.xlu0 %371, %v306
        %v373 = vpop.permute.xlu0 %372
        %376 = vset.pattern.permute.xlu0 0
        %377 = vperm.xlu0 %376, %v307
        %v378 = vpop.permute.xlu0 %377
        %381 = vset.pattern.permute.xlu0 0
        %382 = vperm.xlu0 %381, %v308
        %v383 = vpop.permute.xlu0 %382
        %386 = vset.pattern.permute.xlu0 0
        %387 = vperm.xlu0 %386, %v309
        %v388 = vpop.permute.xlu0 %387
        %v406 = vunpack.c.l.b16 %v278
        %v407 = vunpack.c.l.b16 %v279
        %v408 = vunpack.c.l.b16 %v280
        %v409 = vunpack.c.l.b16 %v281
        %v410 = vunpack.c.l.b16 %v282
        %v411 = vunpack.c.l.b16 %v283
        %v412 = vunpack.c.l.b16 %v284
        %v413 = vunpack.c.l.b16 %v285
        %v414 = vunpack.c.l.b16 %v286
        %v415 = vunpack.c.l.b16 %v287
        %v416 = vunpack.c.l.b16 %v288
        %v417 = vunpack.c.l.b16 %v289
        %v418 = vunpack.c.l.b16 %v290
        %v419 = vunpack.c.l.b16 %v291
        %v420 = vunpack.c.l.b16 %v292
        %v421 = vunpack.c.l.b16 %v293
        %v422 = vpack.c.b16 %v407, %v406
        %v423 = vpack.c.b16 %v409, %v408
        %v424 = vpack.c.b16 %v411, %v410
        %v425 = vpack.c.b16 %v413, %v412
        %v426 = vpack.c.b16 %v415, %v414
        %v427 = vpack.c.b16 %v417, %v416
        %v428 = vpack.c.b16 %v419, %v418
        %v429 = vpack.c.b16 %v421, %v420
        %431 = vst [vmem:[#allocation1] ss:$4 sm:$0xff] %v277
        %v432 = vld.sshfl [vmem:[#allocation1] sm:$0xff pattern:$0x73625140]
        %v433 = vld.sshfl [vmem:[#allocation1 + $0x8] sm:$0xff pattern:$0x73625140]
        %vm434 = vcmask 31744
        %v436 = vsel %vm434, %v422, 0
        %v439 = vsel %vm434, %v423, 0
        %v442 = vsel %vm434, %v424, 0
        %v445 = vsel %vm434, %v425, 0
        %v448 = vsel %vm434, %v426, 0
        %v451 = vsel %vm434, %v427, 0
        %v454 = vsel %vm434, %v428, 0
        %v457 = vsel %vm434, %v429, 0
        %vm459 = vcmask 1041408
        %v460 = vsel %vm459, %v432, 0
        %v462 = vsel %vm459, %v433, 0
        %464 = vmatpush.bf16.msra.mxu0 0
        %465 = vmatpush.bf16.msra.mxu0 0
        %466 = vmatpush.bf16.msra.mxu0 0
        %467 = vmatpush.bf16.msra.mxu0 0
        %468 = vmatpush.bf16.msra.mxu0 0
        %469 = vmatpush.bf16.msra.mxu0 0
        %470 = vmatpush.bf16.msra.mxu0 0
        %471 = vmatpush.bf16.msra.mxu0 %v460
        %472 = vmatmul.bf16.gmra.mxu0 %v436
        %v473 = vpop.f32.mrf.mxu0
        %v474 = vadd.f32 %v313, %v473
        %v475 = vpop.f32.mrf.mxu0
        %v476 = vadd.f32 %v318, %v475
        %477 = vmatmul.bf16.gmra.mxu0 %v439
        %v478 = vpop.f32.mrf.mxu0
        %v479 = vadd.f32 %v323, %v478
        %v480 = vpop.f32.mrf.mxu0
        %v481 = vadd.f32 %v328, %v480
        %482 = vmatmul.bf16.gmra.mxu0 %v442
        %v483 = vpop.f32.mrf.mxu0
        %v484 = vadd.f32 %v333, %v483
        %v485 = vpop.f32.mrf.mxu0
        %v486 = vadd.f32 %v338, %v485
        %487 = vmatmul.bf16.gmra.mxu0 %v445
        %v488 = vpop.f32.mrf.mxu0
        %v489 = vadd.f32 %v343, %v488
        %v490 = vpop.f32.mrf.mxu0
        %v491 = vadd.f32 %v348, %v490
        %492 = vmatmul.bf16.gmra.mxu0 %v448
        %v493 = vpop.f32.mrf.mxu0
        %v494 = vadd.f32 %v353, %v493
        %v495 = vpop.f32.mrf.mxu0
        %v496 = vadd.f32 %v358, %v495
        %497 = vmatmul.bf16.gmra.mxu0 %v451
        %v498 = vpop.f32.mrf.mxu0
        %v499 = vadd.f32 %v363, %v498
        %v500 = vpop.f32.mrf.mxu0
        %v501 = vadd.f32 %v368, %v500
        %502 = vmatmul.bf16.gmra.mxu0 %v454
        %v503 = vpop.f32.mrf.mxu0
        %v504 = vadd.f32 %v373, %v503
        %v505 = vpop.f32.mrf.mxu0
        %v506 = vadd.f32 %v378, %v505
        %507 = vmatmul.bf16.gmra.mxu0 %v457
        %v508 = vpop.f32.mrf.mxu0
        %v509 = vadd.f32 %v383, %v508
        %v510 = vpop.f32.mrf.mxu0
        %v511 = vadd.f32 %v388, %v510
        %512 = vdwg.mxu0
        %513 = vmatpush.bf16.msra.mxu0 0
        %514 = vmatpush.bf16.msra.mxu0 0
        %515 = vmatpush.bf16.msra.mxu0 0
        %516 = vmatpush.bf16.msra.mxu0 0
        %517 = vmatpush.bf16.msra.mxu0 0
        %518 = vmatpush.bf16.msra.mxu0 0
        %519 = vmatpush.bf16.msra.mxu0 0
        %520 = vmatpush.bf16.msra.mxu0 %v462
        %521 = vmatmul.bf16.gmra.mxu0 %v436
        %v522 = vpop.f32.mrf.mxu0
        %v523 = vadd.f32 %v313, %v522
        %v524 = vpop.f32.mrf.mxu0
        %v525 = vadd.f32 %v318, %v524
        %526 = vmatmul.bf16.gmra.mxu0 %v439
        %v527 = vpop.f32.mrf.mxu0
        %v528 = vadd.f32 %v323, %v527
        %v529 = vpop.f32.mrf.mxu0
        %v530 = vadd.f32 %v328, %v529
        %531 = vmatmul.bf16.gmra.mxu0 %v442
        %v532 = vpop.f32.mrf.mxu0
        %v533 = vadd.f32 %v333, %v532
        %v534 = vpop.f32.mrf.mxu0
        %v535 = vadd.f32 %v338, %v534
        %536 = vmatmul.bf16.gmra.mxu0 %v445
        %v537 = vpop.f32.mrf.mxu0
        %v538 = vadd.f32 %v343, %v537
        %v539 = vpop.f32.mrf.mxu0
        %v540 = vadd.f32 %v348, %v539
        %541 = vmatmul.bf16.gmra.mxu0 %v448
        %v542 = vpop.f32.mrf.mxu0
        %v543 = vadd.f32 %v353, %v542
        %v544 = vpop.f32.mrf.mxu0
        %v545 = vadd.f32 %v358, %v544
        %546 = vmatmul.bf16.gmra.mxu0 %v451
        %v547 = vpop.f32.mrf.mxu0
        %v548 = vadd.f32 %v363, %v547
        %v549 = vpop.f32.mrf.mxu0
        %v550 = vadd.f32 %v368, %v549
        %551 = vmatmul.bf16.gmra.mxu0 %v454
        %v552 = vpop.f32.mrf.mxu0
        %v553 = vadd.f32 %v373, %v552
        %v554 = vpop.f32.mrf.mxu0
        %v555 = vadd.f32 %v378, %v554
        %556 = vmatmul.bf16.gmra.mxu0 %v457
        %v557 = vpop.f32.mrf.mxu0
        %v558 = vadd.f32 %v383, %v557
        %v559 = vpop.f32.mrf.mxu0
        %v560 = vadd.f32 %v388, %v559
        %561 = vdwg.mxu0
        %v562 = vmax.f32 %v474, 0.0
        %v563 = vmax.f32 %v523, 0.0
        %v564 = vmax.f32 %v476, 0.0
        %v565 = vmax.f32 %v525, 0.0
        %v566 = vmax.f32 %v479, 0.0
        %v567 = vmax.f32 %v528, 0.0
        %v568 = vmax.f32 %v481, 0.0
        %v569 = vmax.f32 %v530, 0.0
        %v570 = vmax.f32 %v484, 0.0
        %v571 = vmax.f32 %v533, 0.0
        %v572 = vmax.f32 %v486, 0.0
        %v573 = vmax.f32 %v535, 0.0
        %v574 = vmax.f32 %v489, 0.0
        %v575 = vmax.f32 %v538, 0.0
        %v576 = vmax.f32 %v491, 0.0
        %v577 = vmax.f32 %v540, 0.0
        %v578 = vmax.f32 %v494, 0.0
        %v579 = vmax.f32 %v543, 0.0
        %v580 = vmax.f32 %v496, 0.0
        %v581 = vmax.f32 %v545, 0.0
        %v582 = vmax.f32 %v499, 0.0
        %v583 = vmax.f32 %v548, 0.0
        %v584 = vmax.f32 %v501, 0.0
        %v585 = vmax.f32 %v550, 0.0
        %v586 = vmax.f32 %v504, 0.0
        %v587 = vmax.f32 %v553, 0.0
        %v588 = vmax.f32 %v506, 0.0
        %v589 = vmax.f32 %v555, 0.0
        %v590 = vmax.f32 %v509, 0.0
        %v591 = vmax.f32 %v558, 0.0
        %v592 = vmax.f32 %v511, 0.0
        %v593 = vmax.f32 %v560, 0.0
        %v594 = vpack.c.bf16 %v564, %v562
        %v595 = vpack.c.bf16 %v565, %v563
        %v596 = vpack.c.bf16 %v568, %v566
        %v597 = vpack.c.bf16 %v569, %v567
        %v598 = vpack.c.bf16 %v572, %v570
        %v599 = vpack.c.bf16 %v573, %v571
        %v600 = vpack.c.bf16 %v576, %v574
        %v601 = vpack.c.bf16 %v577, %v575
        %v602 = vpack.c.bf16 %v580, %v578
        %v603 = vpack.c.bf16 %v581, %v579
        %v604 = vpack.c.bf16 %v584, %v582
        %v605 = vpack.c.bf16 %v585, %v583
        %v606 = vpack.c.bf16 %v588, %v586
        %v607 = vpack.c.bf16 %v589, %v587
        %v608 = vpack.c.bf16 %v592, %v590
        %v609 = vpack.c.bf16 %v593, %v591
        %v610 = vld [vmem:[%s3] sm:$0xf]
        %v611 = vld [vmem:[%s3 + $0x4] sm:$0xf]
        %v612 = vld [vmem:[%s3 + $0x8] sm:$0xf]
        %v613 = vld [vmem:[%s3 + $0xc] sm:$0xf]
        %v614 = vld [vmem:[%s3 + $0x10] sm:$0xf]
        %v615 = vld [vmem:[%s3 + $0x14] sm:$0xf]
        %v616 = vld [vmem:[%s3 + $0x18] sm:$0xf]
        %v617 = vld [vmem:[%s3 + $0x1c] sm:$0xf]
        %v618 = vld [vmem:[%s3 + $0x20] sm:$0xf]
        %v619 = vld [vmem:[%s3 + $0x24] sm:$0xf]
        %v620 = vld [vmem:[%s3 + $0x28] sm:$0xf]
        %v621 = vld [vmem:[%s3 + $0x2c] sm:$0xf]
        %v622 = vld [vmem:[%s3 + $0x30] sm:$0xf]
        %v623 = vld [vmem:[%s3 + $0x34] sm:$0xf]
        %v624 = vld [vmem:[%s3 + $0x38] sm:$0xf]
        %v625 = vld [vmem:[%s3 + $0x3c] sm:$0xf]
        %v626 = vld [vmem:[%s4] sm:$0xff]
        %v627 = vld [vmem:[%s4 + $0x8] sm:$0xff]
        %v628 = vld [vmem:[%s4 + $0x10] sm:$0xff]
        %v629 = vld [vmem:[%s4 + $0x18] sm:$0xff]
        %v630 = vld [vmem:[%s4 + $0x20] sm:$0xff]
        %v631 = vld [vmem:[%s4 + $0x28] sm:$0xff]
        %v632 = vld [vmem:[%s4 + $0x30] sm:$0xff]
        %v633 = vld [vmem:[%s4 + $0x38] sm:$0xff]
        %v634 = vld [vmem:[%s4 + $0x40] sm:$0xff]
        %v635 = vld [vmem:[%s4 + $0x48] sm:$0xff]
        %v636 = vld [vmem:[%s4 + $0x50] sm:$0xff]
        %v637 = vld [vmem:[%s4 + $0x58] sm:$0xff]
        %v638 = vld [vmem:[%s4 + $0x60] sm:$0xff]
        %v639 = vld [vmem:[%s4 + $0x68] sm:$0xff]
        %v640 = vld [vmem:[%s4 + $0x70] sm:$0xff]
        %v641 = vld [vmem:[%s4 + $0x78] sm:$0xff]
        %643 = vset.pattern.permute.xlu0 0
        %644 = vperm.xlu0 %643, %v626
        %v645 = vpop.permute.xlu0 %644
        %648 = vset.pattern.permute.xlu0 0
        %649 = vperm.xlu0 %648, %v627
        %v650 = vpop.permute.xlu0 %649
        %653 = vset.pattern.permute.xlu0 0
        %654 = vperm.xlu0 %653, %v628
        %v655 = vpop.permute.xlu0 %654
        %658 = vset.pattern.permute.xlu0 0
        %659 = vperm.xlu0 %658, %v629
        %v660 = vpop.permute.xlu0 %659
        %663 = vset.pattern.permute.xlu0 0
        %664 = vperm.xlu0 %663, %v630
        %v665 = vpop.permute.xlu0 %664
        %668 = vset.pattern.permute.xlu0 0
        %669 = vperm.xlu0 %668, %v631
        %v670 = vpop.permute.xlu0 %669
        %673 = vset.pattern.permute.xlu0 0
        %674 = vperm.xlu0 %673, %v632
        %v675 = vpop.permute.xlu0 %674
        %678 = vset.pattern.permute.xlu0 0
        %679 = vperm.xlu0 %678, %v633
        %v680 = vpop.permute.xlu0 %679
        %683 = vset.pattern.permute.xlu0 0
        %684 = vperm.xlu0 %683, %v634
        %v685 = vpop.permute.xlu0 %684
        %688 = vset.pattern.permute.xlu0 0
        %689 = vperm.xlu0 %688, %v635
        %v690 = vpop.permute.xlu0 %689
        %693 = vset.pattern.permute.xlu0 0
        %694 = vperm.xlu0 %693, %v636
        %v695 = vpop.permute.xlu0 %694
        %698 = vset.pattern.permute.xlu0 0
        %699 = vperm.xlu0 %698, %v637
        %v700 = vpop.permute.xlu0 %699
        %703 = vset.pattern.permute.xlu0 0
        %704 = vperm.xlu0 %703, %v638
        %v705 = vpop.permute.xlu0 %704
        %708 = vset.pattern.permute.xlu0 0
        %709 = vperm.xlu0 %708, %v639
        %v710 = vpop.permute.xlu0 %709
        %713 = vset.pattern.permute.xlu0 0
        %714 = vperm.xlu0 %713, %v640
        %v715 = vpop.permute.xlu0 %714
        %718 = vset.pattern.permute.xlu0 0
        %719 = vperm.xlu0 %718, %v641
        %v720 = vpop.permute.xlu0 %719
        %v738 = vunpack.c.l.b16 %v610
        %v739 = vunpack.c.l.b16 %v611
        %v740 = vunpack.c.l.b16 %v612
        %v741 = vunpack.c.l.b16 %v613
        %v742 = vunpack.c.l.b16 %v614
        %v743 = vunpack.c.l.b16 %v615
        %v744 = vunpack.c.l.b16 %v616
        %v745 = vunpack.c.l.b16 %v617
        %v746 = vunpack.c.l.b16 %v618
        %v747 = vunpack.c.l.b16 %v619
        %v748 = vunpack.c.l.b16 %v620
        %v749 = vunpack.c.l.b16 %v621
        %v750 = vunpack.c.l.b16 %v622
        %v751 = vunpack.c.l.b16 %v623
        %v752 = vunpack.c.l.b16 %v624
        %v753 = vunpack.c.l.b16 %v625
        %v754 = vpack.c.b16 %v739, %v738
        %v755 = vpack.c.b16 %v741, %v740
        %v756 = vpack.c.b16 %v743, %v742
        %v757 = vpack.c.b16 %v745, %v744
        %v758 = vpack.c.b16 %v747, %v746
        %v759 = vpack.c.b16 %v749, %v748
        %v760 = vpack.c.b16 %v751, %v750
        %v761 = vpack.c.b16 %v753, %v752
        %770 = vmatpush.bf16.msra.mxu0 %v608
        %771 = vmatpush.bf16.msra.mxu0 %v606
        %772 = vmatpush.bf16.msra.mxu0 %v604
        %773 = vmatpush.bf16.msra.mxu0 %v602
        %774 = vmatpush.bf16.msra.mxu0 %v600
        %775 = vmatpush.bf16.msra.mxu0 %v598
        %776 = vmatpush.bf16.msra.mxu0 %v596
        %777 = vmatpush.bf16.msra.mxu0 %v594
        %778 = vmatmul.bf16.gmra.mxu0 %v754
        %v779 = vpop.f32.mrf.mxu0
        %v780 = vadd.f32 %v645, %v779
        %v781 = vpop.f32.mrf.mxu0
        %v782 = vadd.f32 %v650, %v781
        %783 = vmatmul.bf16.gmra.mxu0 %v755
        %v784 = vpop.f32.mrf.mxu0
        %v785 = vadd.f32 %v655, %v784
        %v786 = vpop.f32.mrf.mxu0
        %v787 = vadd.f32 %v660, %v786
        %788 = vmatmul.bf16.gmra.mxu0 %v756
        %v789 = vpop.f32.mrf.mxu0
        %v790 = vadd.f32 %v665, %v789
        %v791 = vpop.f32.mrf.mxu0
        %v792 = vadd.f32 %v670, %v791
        %793 = vmatmul.bf16.gmra.mxu0 %v757
        %v794 = vpop.f32.mrf.mxu0
        %v795 = vadd.f32 %v675, %v794
        %v796 = vpop.f32.mrf.mxu0
        %v797 = vadd.f32 %v680, %v796
        %798 = vmatmul.bf16.gmra.mxu0 %v758
        %v799 = vpop.f32.mrf.mxu0
        %v800 = vadd.f32 %v685, %v799
        %v801 = vpop.f32.mrf.mxu0
        %v802 = vadd.f32 %v690, %v801
        %803 = vmatmul.bf16.gmra.mxu0 %v759
        %v804 = vpop.f32.mrf.mxu0
        %v805 = vadd.f32 %v695, %v804
        %v806 = vpop.f32.mrf.mxu0
        %v807 = vadd.f32 %v700, %v806
        %808 = vmatmul.bf16.gmra.mxu0 %v760
        %v809 = vpop.f32.mrf.mxu0
        %v810 = vadd.f32 %v705, %v809
        %v811 = vpop.f32.mrf.mxu0
        %v812 = vadd.f32 %v710, %v811
        %813 = vmatmul.bf16.gmra.mxu0 %v761
        %v814 = vpop.f32.mrf.mxu0
        %v815 = vadd.f32 %v715, %v814
        %v816 = vpop.f32.mrf.mxu0
        %v817 = vadd.f32 %v720, %v816
        %818 = vdwg.mxu0
        %819 = vmatpush.bf16.msra.mxu0 %v609
        %820 = vmatpush.bf16.msra.mxu0 %v607
        %821 = vmatpush.bf16.msra.mxu0 %v605
        %822 = vmatpush.bf16.msra.mxu0 %v603
        %823 = vmatpush.bf16.msra.mxu0 %v601
        %824 = vmatpush.bf16.msra.mxu0 %v599
        %825 = vmatpush.bf16.msra.mxu0 %v597
        %826 = vmatpush.bf16.msra.mxu0 %v595
        %827 = vmatmul.bf16.gmra.mxu0 %v754
        %v828 = vpop.f32.mrf.mxu0
        %v829 = vadd.f32 %v645, %v828
        %v830 = vpop.f32.mrf.mxu0
        %v831 = vadd.f32 %v650, %v830
        %832 = vmatmul.bf16.gmra.mxu0 %v755
        %v833 = vpop.f32.mrf.mxu0
        %v834 = vadd.f32 %v655, %v833
        %v835 = vpop.f32.mrf.mxu0
        %v836 = vadd.f32 %v660, %v835
        %837 = vmatmul.bf16.gmra.mxu0 %v756
        %v838 = vpop.f32.mrf.mxu0
        %v839 = vadd.f32 %v665, %v838
        %v840 = vpop.f32.mrf.mxu0
        %v841 = vadd.f32 %v670, %v840
        %842 = vmatmul.bf16.gmra.mxu0 %v757
        %v843 = vpop.f32.mrf.mxu0
        %v844 = vadd.f32 %v675, %v843
        %v845 = vpop.f32.mrf.mxu0
        %v846 = vadd.f32 %v680, %v845
        %847 = vmatmul.bf16.gmra.mxu0 %v758
        %v848 = vpop.f32.mrf.mxu0
        %v849 = vadd.f32 %v685, %v848
        %v850 = vpop.f32.mrf.mxu0
        %v851 = vadd.f32 %v690, %v850
        %852 = vmatmul.bf16.gmra.mxu0 %v759
        %v853 = vpop.f32.mrf.mxu0
        %v854 = vadd.f32 %v695, %v853
        %v855 = vpop.f32.mrf.mxu0
        %v856 = vadd.f32 %v700, %v855
        %857 = vmatmul.bf16.gmra.mxu0 %v760
        %v858 = vpop.f32.mrf.mxu0
        %v859 = vadd.f32 %v705, %v858
        %v860 = vpop.f32.mrf.mxu0
        %v861 = vadd.f32 %v710, %v860
        %862 = vmatmul.bf16.gmra.mxu0 %v761
        %v863 = vpop.f32.mrf.mxu0
        %v864 = vadd.f32 %v715, %v863
        %v865 = vpop.f32.mrf.mxu0
        %v866 = vadd.f32 %v720, %v865
        %867 = vdwg.mxu0
        %v868 = vmax.f32 %v780, 0.0
        %v869 = vmax.f32 %v829, 0.0
        %v870 = vmax.f32 %v782, 0.0
        %v871 = vmax.f32 %v831, 0.0
        %v872 = vmax.f32 %v785, 0.0
        %v873 = vmax.f32 %v834, 0.0
        %v874 = vmax.f32 %v787, 0.0
        %v875 = vmax.f32 %v836, 0.0
        %v876 = vmax.f32 %v790, 0.0
        %v877 = vmax.f32 %v839, 0.0
        %v878 = vmax.f32 %v792, 0.0
        %v879 = vmax.f32 %v841, 0.0
        %v880 = vmax.f32 %v795, 0.0
        %v881 = vmax.f32 %v844, 0.0
        %v882 = vmax.f32 %v797, 0.0
        %v883 = vmax.f32 %v846, 0.0
        %v884 = vmax.f32 %v800, 0.0
        %v885 = vmax.f32 %v849, 0.0
        %v886 = vmax.f32 %v802, 0.0
        %v887 = vmax.f32 %v851, 0.0
        %v888 = vmax.f32 %v805, 0.0
        %v889 = vmax.f32 %v854, 0.0
        %v890 = vmax.f32 %v807, 0.0
        %v891 = vmax.f32 %v856, 0.0
        %v892 = vmax.f32 %v810, 0.0
        %v893 = vmax.f32 %v859, 0.0
        %v894 = vmax.f32 %v812, 0.0
        %v895 = vmax.f32 %v861, 0.0
        %v896 = vmax.f32 %v815, 0.0
        %v897 = vmax.f32 %v864, 0.0
        %v898 = vmax.f32 %v817, 0.0
        %v899 = vmax.f32 %v866, 0.0
        %v900 = vpack.c.bf16 %v870, %v868
        %v901 = vpack.c.bf16 %v871, %v869
        %v902 = vpack.c.bf16 %v874, %v872
        %v903 = vpack.c.bf16 %v875, %v873
        %v904 = vpack.c.bf16 %v878, %v876
        %v905 = vpack.c.bf16 %v879, %v877
        %v906 = vpack.c.bf16 %v882, %v880
        %v907 = vpack.c.bf16 %v883, %v881
        %v908 = vpack.c.bf16 %v886, %v884
        %v909 = vpack.c.bf16 %v887, %v885
        %v910 = vpack.c.bf16 %v890, %v888
        %v911 = vpack.c.bf16 %v891, %v889
        %v912 = vpack.c.bf16 %v894, %v892
        %v913 = vpack.c.bf16 %v895, %v893
        %v914 = vpack.c.bf16 %v898, %v896
        %v915 = vpack.c.bf16 %v899, %v897
        %v916 = vld [vmem:[%s5] sm:$0x3]
        %v917 = vld [vmem:[%s6] sm:$0xf]
        %919 = vset.pattern.permute.xlu0 0
        %920 = vperm.xlu0 %919, %v917
        %v921 = vpop.permute.xlu0 %920
        %923 = vmatpush.bf16.msra.mxu0 %v914
        %924 = vmatpush.bf16.msra.mxu0 %v912
        %925 = vmatpush.bf16.msra.mxu0 %v910
        %926 = vmatpush.bf16.msra.mxu0 %v908
        %927 = vmatpush.bf16.msra.mxu0 %v906
        %928 = vmatpush.bf16.msra.mxu0 %v904
        %929 = vmatpush.bf16.msra.mxu0 %v902
        %930 = vmatpush.bf16.msra.mxu0 %v900
        %931 = vmatmul.bf16.gmra.mxu0 %v916
        %v932 = vpop.f32.mrf.mxu0
        %v933 = vadd.f32 %v921, %v932
        %v934 = vpop.f32.mrf.mxu0
        %935 = vdwg.mxu0
        %936 = vmatpush.bf16.msra.mxu0 %v915
        %937 = vmatpush.bf16.msra.mxu0 %v913
        %938 = vmatpush.bf16.msra.mxu0 %v911
        %939 = vmatpush.bf16.msra.mxu0 %v909
        %940 = vmatpush.bf16.msra.mxu0 %v907
        %941 = vmatpush.bf16.msra.mxu0 %v905
        %942 = vmatpush.bf16.msra.mxu0 %v903
        %943 = vmatpush.bf16.msra.mxu0 %v901
        %944 = vmatmul.bf16.gmra.mxu0 %v916
        %v945 = vpop.f32.mrf.mxu0
        %v946 = vadd.f32 %v921, %v945
        %v947 = vpop.f32.mrf.mxu0
        %948 = vdwg.mxu0
        %v951 = vrot.slane %v946, 4
        %vm952 = vcmask 1043456
        %v953 = vsel %vm952, %v933, %v951
        %955 = vst [vmem:[%s268] sm:$0xff] %v953
        %s956 = scalar_lea.vmem %s1, 64
        %v957 = vld [vmem:[%s956] sm:$0xf]
        %v958 = vld [vmem:[%s956 + $0x4] sm:$0xf]
        %v959 = vld [vmem:[%s956 + $0x8] sm:$0xf]
        %v960 = vld [vmem:[%s956 + $0xc] sm:$0xf]
        %v961 = vld [vmem:[%s956 + $0x10] sm:$0xf]
        %v962 = vld [vmem:[%s956 + $0x14] sm:$0xf]
        %v963 = vld [vmem:[%s956 + $0x18] sm:$0xf]
        %v964 = vld [vmem:[%s956 + $0x1c] sm:$0xf]
        %v965 = vld [vmem:[%s956 + $0x20] sm:$0xf]
        %v966 = vld [vmem:[%s956 + $0x24] sm:$0xf]
        %v967 = vld [vmem:[%s956 + $0x28] sm:$0xf]
        %v968 = vld [vmem:[%s956 + $0x2c] sm:$0xf]
        %v969 = vld [vmem:[%s956 + $0x30] sm:$0xf]
        %v970 = vld [vmem:[%s956 + $0x34] sm:$0xf]
        %v971 = vld [vmem:[%s956 + $0x38] sm:$0xf]
        %v972 = vld [vmem:[%s956 + $0x3c] sm:$0xf]
        %s973 = scalar_lea.vmem %s2, 128
        %v974 = vld [vmem:[%s973] sm:$0xff]
        %v975 = vld [vmem:[%s973 + $0x8] sm:$0xff]
        %v976 = vld [vmem:[%s973 + $0x10] sm:$0xff]
        %v977 = vld [vmem:[%s973 + $0x18] sm:$0xff]
        %v978 = vld [vmem:[%s973 + $0x20] sm:$0xff]
        %v979 = vld [vmem:[%s973 + $0x28] sm:$0xff]
        %v980 = vld [vmem:[%s973 + $0x30] sm:$0xff]
        %v981 = vld [vmem:[%s973 + $0x38] sm:$0xff]
        %v982 = vld [vmem:[%s973 + $0x40] sm:$0xff]
        %v983 = vld [vmem:[%s973 + $0x48] sm:$0xff]
        %v984 = vld [vmem:[%s973 + $0x50] sm:$0xff]
        %v985 = vld [vmem:[%s973 + $0x58] sm:$0xff]
        %v986 = vld [vmem:[%s973 + $0x60] sm:$0xff]
        %v987 = vld [vmem:[%s973 + $0x68] sm:$0xff]
        %v988 = vld [vmem:[%s973 + $0x70] sm:$0xff]
        %v989 = vld [vmem:[%s973 + $0x78] sm:$0xff]
        %991 = vset.pattern.permute.xlu0 0
        %992 = vperm.xlu0 %991, %v974
        %v993 = vpop.permute.xlu0 %992
        %996 = vset.pattern.permute.xlu0 0
        %997 = vperm.xlu0 %996, %v975
        %v998 = vpop.permute.xlu0 %997
        %1001 = vset.pattern.permute.xlu0 0
        %1002 = vperm.xlu0 %1001, %v976
        %v1003 = vpop.permute.xlu0 %1002
        %1006 = vset.pattern.permute.xlu0 0
        %1007 = vperm.xlu0 %1006, %v977
        %v1008 = vpop.permute.xlu0 %1007
        %1011 = vset.pattern.permute.xlu0 0
        %1012 = vperm.xlu0 %1011, %v978
        %v1013 = vpop.permute.xlu0 %1012
        %1016 = vset.pattern.permute.xlu0 0
        %1017 = vperm.xlu0 %1016, %v979
        %v1018 = vpop.permute.xlu0 %1017
        %1021 = vset.pattern.permute.xlu0 0
        %1022 = vperm.xlu0 %1021, %v980
        %v1023 = vpop.permute.xlu0 %1022
        %1026 = vset.pattern.permute.xlu0 0
        %1027 = vperm.xlu0 %1026, %v981
        %v1028 = vpop.permute.xlu0 %1027
        %1031 = vset.pattern.permute.xlu0 0
        %1032 = vperm.xlu0 %1031, %v982
        %v1033 = vpop.permute.xlu0 %1032
        %1036 = vset.pattern.permute.xlu0 0
        %1037 = vperm.xlu0 %1036, %v983
        %v1038 = vpop.permute.xlu0 %1037
        %1041 = vset.pattern.permute.xlu0 0
        %1042 = vperm.xlu0 %1041, %v984
        %v1043 = vpop.permute.xlu0 %1042
        %1046 = vset.pattern.permute.xlu0 0
        %1047 = vperm.xlu0 %1046, %v985
        %v1048 = vpop.permute.xlu0 %1047
        %1051 = vset.pattern.permute.xlu0 0
        %1052 = vperm.xlu0 %1051, %v986
        %v1053 = vpop.permute.xlu0 %1052
        %1056 = vset.pattern.permute.xlu0 0
        %1057 = vperm.xlu0 %1056, %v987
        %v1058 = vpop.permute.xlu0 %1057
        %1061 = vset.pattern.permute.xlu0 0
        %1062 = vperm.xlu0 %1061, %v988
        %v1063 = vpop.permute.xlu0 %1062
        %1066 = vset.pattern.permute.xlu0 0
        %1067 = vperm.xlu0 %1066, %v989
        %v1068 = vpop.permute.xlu0 %1067
        %v1086 = vunpack.c.l.b16 %v957
        %v1087 = vunpack.c.l.b16 %v958
        %v1088 = vunpack.c.l.b16 %v959
        %v1089 = vunpack.c.l.b16 %v960
        %v1090 = vunpack.c.l.b16 %v961
        %v1091 = vunpack.c.l.b16 %v962
        %v1092 = vunpack.c.l.b16 %v963
        %v1093 = vunpack.c.l.b16 %v964
        %v1094 = vunpack.c.l.b16 %v965
        %v1095 = vunpack.c.l.b16 %v966
        %v1096 = vunpack.c.l.b16 %v967
        %v1097 = vunpack.c.l.b16 %v968
        %v1098 = vunpack.c.l.b16 %v969
        %v1099 = vunpack.c.l.b16 %v970
        %v1100 = vunpack.c.l.b16 %v971
        %v1101 = vunpack.c.l.b16 %v972
        %v1102 = vpack.c.b16 %v1087, %v1086
        %v1103 = vpack.c.b16 %v1089, %v1088
        %v1104 = vpack.c.b16 %v1091, %v1090
        %v1105 = vpack.c.b16 %v1093, %v1092
        %v1106 = vpack.c.b16 %v1095, %v1094
        %v1107 = vpack.c.b16 %v1097, %v1096
        %v1108 = vpack.c.b16 %v1099, %v1098
        %v1109 = vpack.c.b16 %v1101, %v1100
        %1110 = vst [vmem:[#allocation1] ss:$4 sm:$0xff] %v277
        %v1111 = vld.sshfl [vmem:[#allocation1] sm:$0xff pattern:$0x73625140]
        %v1112 = vld.sshfl [vmem:[#allocation1 + $0x8] sm:$0xff pattern:$0x73625140]
        %v1114 = vsel %vm434, %v1102, 0
        %v1117 = vsel %vm434, %v1103, 0
        %v1120 = vsel %vm434, %v1104, 0
        %v1123 = vsel %vm434, %v1105, 0
        %v1126 = vsel %vm434, %v1106, 0
        %v1129 = vsel %vm434, %v1107, 0
        %v1132 = vsel %vm434, %v1108, 0
        %v1135 = vsel %vm434, %v1109, 0
        %v1137 = vsel %vm459, %v1111, 0
        %v1139 = vsel %vm459, %v1112, 0
        %1141 = vmatpush.bf16.msra.mxu0 0
        %1142 = vmatpush.bf16.msra.mxu0 0
        %1143 = vmatpush.bf16.msra.mxu0 0
        %1144 = vmatpush.bf16.msra.mxu0 0
        %1145 = vmatpush.bf16.msra.mxu0 0
        %1146 = vmatpush.bf16.msra.mxu0 0
        %1147 = vmatpush.bf16.msra.mxu0 0
        %1148 = vmatpush.bf16.msra.mxu0 %v1137
        %1149 = vmatmul.bf16.gmra.mxu0 %v1114
        %v1150 = vpop.f32.mrf.mxu0
        %v1151 = vadd.f32 %v993, %v1150
        %v1152 = vpop.f32.mrf.mxu0
        %v1153 = vadd.f32 %v998, %v1152
        %1154 = vmatmul.bf16.gmra.mxu0 %v1117
        %v1155 = vpop.f32.mrf.mxu0
        %v1156 = vadd.f32 %v1003, %v1155
        %v1157 = vpop.f32.mrf.mxu0
        %v1158 = vadd.f32 %v1008, %v1157
        %1159 = vmatmul.bf16.gmra.mxu0 %v1120
        %v1160 = vpop.f32.mrf.mxu0
        %v1161 = vadd.f32 %v1013, %v1160
        %v1162 = vpop.f32.mrf.mxu0
        %v1163 = vadd.f32 %v1018, %v1162
        %1164 = vmatmul.bf16.gmra.mxu0 %v1123
        %v1165 = vpop.f32.mrf.mxu0
        %v1166 = vadd.f32 %v1023, %v1165
        %v1167 = vpop.f32.mrf.mxu0
        %v1168 = vadd.f32 %v1028, %v1167
        %1169 = vmatmul.bf16.gmra.mxu0 %v1126
        %v1170 = vpop.f32.mrf.mxu0
        %v1171 = vadd.f32 %v1033, %v1170
        %v1172 = vpop.f32.mrf.mxu0
        %v1173 = vadd.f32 %v1038, %v1172
        %1174 = vmatmul.bf16.gmra.mxu0 %v1129
        %v1175 = vpop.f32.mrf.mxu0
        %v1176 = vadd.f32 %v1043, %v1175
        %v1177 = vpop.f32.mrf.mxu0
        %v1178 = vadd.f32 %v1048, %v1177
        %1179 = vmatmul.bf16.gmra.mxu0 %v1132
        %v1180 = vpop.f32.mrf.mxu0
        %v1181 = vadd.f32 %v1053, %v1180
        %v1182 = vpop.f32.mrf.mxu0
        %v1183 = vadd.f32 %v1058, %v1182
        %1184 = vmatmul.bf16.gmra.mxu0 %v1135
        %v1185 = vpop.f32.mrf.mxu0
        %v1186 = vadd.f32 %v1063, %v1185
        %v1187 = vpop.f32.mrf.mxu0
        %v1188 = vadd.f32 %v1068, %v1187
        %1189 = vdwg.mxu0
        %1190 = vmatpush.bf16.msra.mxu0 0
        %1191 = vmatpush.bf16.msra.mxu0 0
        %1192 = vmatpush.bf16.msra.mxu0 0
        %1193 = vmatpush.bf16.msra.mxu0 0
        %1194 = vmatpush.bf16.msra.mxu0 0
        %1195 = vmatpush.bf16.msra.mxu0 0
        %1196 = vmatpush.bf16.msra.mxu0 0
        %1197 = vmatpush.bf16.msra.mxu0 %v1139
        %1198 = vmatmul.bf16.gmra.mxu0 %v1114
        %v1199 = vpop.f32.mrf.mxu0
        %v1200 = vadd.f32 %v993, %v1199
        %v1201 = vpop.f32.mrf.mxu0
        %v1202 = vadd.f32 %v998, %v1201
        %1203 = vmatmul.bf16.gmra.mxu0 %v1117
        %v1204 = vpop.f32.mrf.mxu0
        %v1205 = vadd.f32 %v1003, %v1204
        %v1206 = vpop.f32.mrf.mxu0
        %v1207 = vadd.f32 %v1008, %v1206
        %1208 = vmatmul.bf16.gmra.mxu0 %v1120
        %v1209 = vpop.f32.mrf.mxu0
        %v1210 = vadd.f32 %v1013, %v1209
        %v1211 = vpop.f32.mrf.mxu0
        %v1212 = vadd.f32 %v1018, %v1211
        %1213 = vmatmul.bf16.gmra.mxu0 %v1123
        %v1214 = vpop.f32.mrf.mxu0
        %v1215 = vadd.f32 %v1023, %v1214
        %v1216 = vpop.f32.mrf.mxu0
        %v1217 = vadd.f32 %v1028, %v1216
        %1218 = vmatmul.bf16.gmra.mxu0 %v1126
        %v1219 = vpop.f32.mrf.mxu0
        %v1220 = vadd.f32 %v1033, %v1219
        %v1221 = vpop.f32.mrf.mxu0
        %v1222 = vadd.f32 %v1038, %v1221
        %1223 = vmatmul.bf16.gmra.mxu0 %v1129
        %v1224 = vpop.f32.mrf.mxu0
        %v1225 = vadd.f32 %v1043, %v1224
        %v1226 = vpop.f32.mrf.mxu0
        %v1227 = vadd.f32 %v1048, %v1226
        %1228 = vmatmul.bf16.gmra.mxu0 %v1132
        %v1229 = vpop.f32.mrf.mxu0
        %v1230 = vadd.f32 %v1053, %v1229
        %v1231 = vpop.f32.mrf.mxu0
        %v1232 = vadd.f32 %v1058, %v1231
        %1233 = vmatmul.bf16.gmra.mxu0 %v1135
        %v1234 = vpop.f32.mrf.mxu0
        %v1235 = vadd.f32 %v1063, %v1234
        %v1236 = vpop.f32.mrf.mxu0
        %v1237 = vadd.f32 %v1068, %v1236
        %1238 = vdwg.mxu0
        %v1239 = vmax.f32 %v1151, 0.0
        %v1240 = vmax.f32 %v1200, 0.0
        %v1241 = vmax.f32 %v1153, 0.0
        %v1242 = vmax.f32 %v1202, 0.0
        %v1243 = vmax.f32 %v1156, 0.0
        %v1244 = vmax.f32 %v1205, 0.0
        %v1245 = vmax.f32 %v1158, 0.0
        %v1246 = vmax.f32 %v1207, 0.0
        %v1247 = vmax.f32 %v1161, 0.0
        %v1248 = vmax.f32 %v1210, 0.0
        %v1249 = vmax.f32 %v1163, 0.0
        %v1250 = vmax.f32 %v1212, 0.0
        %v1251 = vmax.f32 %v1166, 0.0
        %v1252 = vmax.f32 %v1215, 0.0
        %v1253 = vmax.f32 %v1168, 0.0
        %v1254 = vmax.f32 %v1217, 0.0
        %v1255 = vmax.f32 %v1171, 0.0
        %v1256 = vmax.f32 %v1220, 0.0
        %v1257 = vmax.f32 %v1173, 0.0
        %v1258 = vmax.f32 %v1222, 0.0
        %v1259 = vmax.f32 %v1176, 0.0
        %v1260 = vmax.f32 %v1225, 0.0
        %v1261 = vmax.f32 %v1178, 0.0
        %v1262 = vmax.f32 %v1227, 0.0
        %v1263 = vmax.f32 %v1181, 0.0
        %v1264 = vmax.f32 %v1230, 0.0
        %v1265 = vmax.f32 %v1183, 0.0
        %v1266 = vmax.f32 %v1232, 0.0
        %v1267 = vmax.f32 %v1186, 0.0
        %v1268 = vmax.f32 %v1235, 0.0
        %v1269 = vmax.f32 %v1188, 0.0
        %v1270 = vmax.f32 %v1237, 0.0
        %v1271 = vpack.c.bf16 %v1241, %v1239
        %v1272 = vpack.c.bf16 %v1242, %v1240
        %v1273 = vpack.c.bf16 %v1245, %v1243
        %v1274 = vpack.c.bf16 %v1246, %v1244
        %v1275 = vpack.c.bf16 %v1249, %v1247
        %v1276 = vpack.c.bf16 %v1250, %v1248
        %v1277 = vpack.c.bf16 %v1253, %v1251
        %v1278 = vpack.c.bf16 %v1254, %v1252
        %v1279 = vpack.c.bf16 %v1257, %v1255
        %v1280 = vpack.c.bf16 %v1258, %v1256
        %v1281 = vpack.c.bf16 %v1261, %v1259
        %v1282 = vpack.c.bf16 %v1262, %v1260
        %v1283 = vpack.c.bf16 %v1265, %v1263
        %v1284 = vpack.c.bf16 %v1266, %v1264
        %v1285 = vpack.c.bf16 %v1269, %v1267
        %v1286 = vpack.c.bf16 %v1270, %v1268
        %s1287 = scalar_lea.vmem %s3, 64
        %v1288 = vld [vmem:[%s1287] sm:$0xf]
        %v1289 = vld [vmem:[%s1287 + $0x4] sm:$0xf]
        %v1290 = vld [vmem:[%s1287 + $0x8] sm:$0xf]
        %v1291 = vld [vmem:[%s1287 + $0xc] sm:$0xf]
        %v1292 = vld [vmem:[%s1287 + $0x10] sm:$0xf]
        %v1293 = vld [vmem:[%s1287 + $0x14] sm:$0xf]
        %v1294 = vld [vmem:[%s1287 + $0x18] sm:$0xf]
        %v1295 = vld [vmem:[%s1287 + $0x1c] sm:$0xf]
        %v1296 = vld [vmem:[%s1287 + $0x20] sm:$0xf]
        %v1297 = vld [vmem:[%s1287 + $0x24] sm:$0xf]
        %v1298 = vld [vmem:[%s1287 + $0x28] sm:$0xf]
        %v1299 = vld [vmem:[%s1287 + $0x2c] sm:$0xf]
        %v1300 = vld [vmem:[%s1287 + $0x30] sm:$0xf]
        %v1301 = vld [vmem:[%s1287 + $0x34] sm:$0xf]
        %v1302 = vld [vmem:[%s1287 + $0x38] sm:$0xf]
        %v1303 = vld [vmem:[%s1287 + $0x3c] sm:$0xf]
        %s1304 = scalar_lea.vmem %s4, 128
        %v1305 = vld [vmem:[%s1304] sm:$0xff]
        %v1306 = vld [vmem:[%s1304 + $0x8] sm:$0xff]
        %v1307 = vld [vmem:[%s1304 + $0x10] sm:$0xff]
        %v1308 = vld [vmem:[%s1304 + $0x18] sm:$0xff]
        %v1309 = vld [vmem:[%s1304 + $0x20] sm:$0xff]
        %v1310 = vld [vmem:[%s1304 + $0x28] sm:$0xff]
        %v1311 = vld [vmem:[%s1304 + $0x30] sm:$0xff]
        %v1312 = vld [vmem:[%s1304 + $0x38] sm:$0xff]
        %v1313 = vld [vmem:[%s1304 + $0x40] sm:$0xff]
        %v1314 = vld [vmem:[%s1304 + $0x48] sm:$0xff]
        %v1315 = vld [vmem:[%s1304 + $0x50] sm:$0xff]
        %v1316 = vld [vmem:[%s1304 + $0x58] sm:$0xff]
        %v1317 = vld [vmem:[%s1304 + $0x60] sm:$0xff]
        %v1318 = vld [vmem:[%s1304 + $0x68] sm:$0xff]
        %v1319 = vld [vmem:[%s1304 + $0x70] sm:$0xff]
        %v1320 = vld [vmem:[%s1304 + $0x78] sm:$0xff]
        %1322 = vset.pattern.permute.xlu0 0
        %1323 = vperm.xlu0 %1322, %v1305
        %v1324 = vpop.permute.xlu0 %1323
        %1327 = vset.pattern.permute.xlu0 0
        %1328 = vperm.xlu0 %1327, %v1306
        %v1329 = vpop.permute.xlu0 %1328
        %1332 = vset.pattern.permute.xlu0 0
        %1333 = vperm.xlu0 %1332, %v1307
        %v1334 = vpop.permute.xlu0 %1333
        %1337 = vset.pattern.permute.xlu0 0
        %1338 = vperm.xlu0 %1337, %v1308
        %v1339 = vpop.permute.xlu0 %1338
        %1342 = vset.pattern.permute.xlu0 0
        %1343 = vperm.xlu0 %1342, %v1309
        %v1344 = vpop.permute.xlu0 %1343
        %1347 = vset.pattern.permute.xlu0 0
        %1348 = vperm.xlu0 %1347, %v1310
        %v1349 = vpop.permute.xlu0 %1348
        %1352 = vset.pattern.permute.xlu0 0
        %1353 = vperm.xlu0 %1352, %v1311
        %v1354 = vpop.permute.xlu0 %1353
        %1357 = vset.pattern.permute.xlu0 0
        %1358 = vperm.xlu0 %1357, %v1312
        %v1359 = vpop.permute.xlu0 %1358
        %1362 = vset.pattern.permute.xlu0 0
        %1363 = vperm.xlu0 %1362, %v1313
        %v1364 = vpop.permute.xlu0 %1363
        %1367 = vset.pattern.permute.xlu0 0
        %1368 = vperm.xlu0 %1367, %v1314
        %v1369 = vpop.permute.xlu0 %1368
        %1372 = vset.pattern.permute.xlu0 0
        %1373 = vperm.xlu0 %1372, %v1315
        %v1374 = vpop.permute.xlu0 %1373
        %1377 = vset.pattern.permute.xlu0 0
        %1378 = vperm.xlu0 %1377, %v1316
        %v1379 = vpop.permute.xlu0 %1378
        %1382 = vset.pattern.permute.xlu0 0
        %1383 = vperm.xlu0 %1382, %v1317
        %v1384 = vpop.permute.xlu0 %1383
        %1387 = vset.pattern.permute.xlu0 0
        %1388 = vperm.xlu0 %1387, %v1318
        %v1389 = vpop.permute.xlu0 %1388
        %1392 = vset.pattern.permute.xlu0 0
        %1393 = vperm.xlu0 %1392, %v1319
        %v1394 = vpop.permute.xlu0 %1393
        %1397 = vset.pattern.permute.xlu0 0
        %1398 = vperm.xlu0 %1397, %v1320
        %v1399 = vpop.permute.xlu0 %1398
        %v1417 = vunpack.c.l.b16 %v1288
        %v1418 = vunpack.c.l.b16 %v1289
        %v1419 = vunpack.c.l.b16 %v1290
        %v1420 = vunpack.c.l.b16 %v1291
        %v1421 = vunpack.c.l.b16 %v1292
        %v1422 = vunpack.c.l.b16 %v1293
        %v1423 = vunpack.c.l.b16 %v1294
        %v1424 = vunpack.c.l.b16 %v1295
        %v1425 = vunpack.c.l.b16 %v1296
        %v1426 = vunpack.c.l.b16 %v1297
        %v1427 = vunpack.c.l.b16 %v1298
        %v1428 = vunpack.c.l.b16 %v1299
        %v1429 = vunpack.c.l.b16 %v1300
        %v1430 = vunpack.c.l.b16 %v1301
        %v1431 = vunpack.c.l.b16 %v1302
        %v1432 = vunpack.c.l.b16 %v1303
        %v1433 = vpack.c.b16 %v1418, %v1417
        %v1434 = vpack.c.b16 %v1420, %v1419
        %v1435 = vpack.c.b16 %v1422, %v1421
        %v1436 = vpack.c.b16 %v1424, %v1423
        %v1437 = vpack.c.b16 %v1426, %v1425
        %v1438 = vpack.c.b16 %v1428, %v1427
        %v1439 = vpack.c.b16 %v1430, %v1429
        %v1440 = vpack.c.b16 %v1432, %v1431
        %1449 = vmatpush.bf16.msra.mxu0 %v1285
        %1450 = vmatpush.bf16.msra.mxu0 %v1283
        %1451 = vmatpush.bf16.msra.mxu0 %v1281
        %1452 = vmatpush.bf16.msra.mxu0 %v1279
        %1453 = vmatpush.bf16.msra.mxu0 %v1277
        %1454 = vmatpush.bf16.msra.mxu0 %v1275
        %1455 = vmatpush.bf16.msra.mxu0 %v1273
        %1456 = vmatpush.bf16.msra.mxu0 %v1271
        %1457 = vmatmul.bf16.gmra.mxu0 %v1433
        %v1458 = vpop.f32.mrf.mxu0
        %v1459 = vadd.f32 %v1324, %v1458
        %v1460 = vpop.f32.mrf.mxu0
        %v1461 = vadd.f32 %v1329, %v1460
        %1462 = vmatmul.bf16.gmra.mxu0 %v1434
        %v1463 = vpop.f32.mrf.mxu0
        %v1464 = vadd.f32 %v1334, %v1463
        %v1465 = vpop.f32.mrf.mxu0
        %v1466 = vadd.f32 %v1339, %v1465
        %1467 = vmatmul.bf16.gmra.mxu0 %v1435
        %v1468 = vpop.f32.mrf.mxu0
        %v1469 = vadd.f32 %v1344, %v1468
        %v1470 = vpop.f32.mrf.mxu0
        %v1471 = vadd.f32 %v1349, %v1470
        %1472 = vmatmul.bf16.gmra.mxu0 %v1436
        %v1473 = vpop.f32.mrf.mxu0
        %v1474 = vadd.f32 %v1354, %v1473
        %v1475 = vpop.f32.mrf.mxu0
        %v1476 = vadd.f32 %v1359, %v1475
        %1477 = vmatmul.bf16.gmra.mxu0 %v1437
        %v1478 = vpop.f32.mrf.mxu0
        %v1479 = vadd.f32 %v1364, %v1478
        %v1480 = vpop.f32.mrf.mxu0
        %v1481 = vadd.f32 %v1369, %v1480
        %1482 = vmatmul.bf16.gmra.mxu0 %v1438
        %v1483 = vpop.f32.mrf.mxu0
        %v1484 = vadd.f32 %v1374, %v1483
        %v1485 = vpop.f32.mrf.mxu0
        %v1486 = vadd.f32 %v1379, %v1485
        %1487 = vmatmul.bf16.gmra.mxu0 %v1439
        %v1488 = vpop.f32.mrf.mxu0
        %v1489 = vadd.f32 %v1384, %v1488
        %v1490 = vpop.f32.mrf.mxu0
        %v1491 = vadd.f32 %v1389, %v1490
        %1492 = vmatmul.bf16.gmra.mxu0 %v1440
        %v1493 = vpop.f32.mrf.mxu0
        %v1494 = vadd.f32 %v1394, %v1493
        %v1495 = vpop.f32.mrf.mxu0
        %v1496 = vadd.f32 %v1399, %v1495
        %1497 = vdwg.mxu0
        %1498 = vmatpush.bf16.msra.mxu0 %v1286
        %1499 = vmatpush.bf16.msra.mxu0 %v1284
        %1500 = vmatpush.bf16.msra.mxu0 %v1282
        %1501 = vmatpush.bf16.msra.mxu0 %v1280
        %1502 = vmatpush.bf16.msra.mxu0 %v1278
        %1503 = vmatpush.bf16.msra.mxu0 %v1276
        %1504 = vmatpush.bf16.msra.mxu0 %v1274
        %1505 = vmatpush.bf16.msra.mxu0 %v1272
        %1506 = vmatmul.bf16.gmra.mxu0 %v1433
        %v1507 = vpop.f32.mrf.mxu0
        %v1508 = vadd.f32 %v1324, %v1507
        %v1509 = vpop.f32.mrf.mxu0
        %v1510 = vadd.f32 %v1329, %v1509
        %1511 = vmatmul.bf16.gmra.mxu0 %v1434
        %v1512 = vpop.f32.mrf.mxu0
        %v1513 = vadd.f32 %v1334, %v1512
        %v1514 = vpop.f32.mrf.mxu0
        %v1515 = vadd.f32 %v1339, %v1514
        %1516 = vmatmul.bf16.gmra.mxu0 %v1435
        %v1517 = vpop.f32.mrf.mxu0
        %v1518 = vadd.f32 %v1344, %v1517
        %v1519 = vpop.f32.mrf.mxu0
        %v1520 = vadd.f32 %v1349, %v1519
        %1521 = vmatmul.bf16.gmra.mxu0 %v1436
        %v1522 = vpop.f32.mrf.mxu0
        %v1523 = vadd.f32 %v1354, %v1522
        %v1524 = vpop.f32.mrf.mxu0
        %v1525 = vadd.f32 %v1359, %v1524
        %1526 = vmatmul.bf16.gmra.mxu0 %v1437
        %v1527 = vpop.f32.mrf.mxu0
        %v1528 = vadd.f32 %v1364, %v1527
        %v1529 = vpop.f32.mrf.mxu0
        %v1530 = vadd.f32 %v1369, %v1529
        %1531 = vmatmul.bf16.gmra.mxu0 %v1438
        %v1532 = vpop.f32.mrf.mxu0
        %v1533 = vadd.f32 %v1374, %v1532
        %v1534 = vpop.f32.mrf.mxu0
        %v1535 = vadd.f32 %v1379, %v1534
        %1536 = vmatmul.bf16.gmra.mxu0 %v1439
        %v1537 = vpop.f32.mrf.mxu0
        %v1538 = vadd.f32 %v1384, %v1537
        %v1539 = vpop.f32.mrf.mxu0
        %v1540 = vadd.f32 %v1389, %v1539
        %1541 = vmatmul.bf16.gmra.mxu0 %v1440
        %v1542 = vpop.f32.mrf.mxu0
        %v1543 = vadd.f32 %v1394, %v1542
        %v1544 = vpop.f32.mrf.mxu0
        %v1545 = vadd.f32 %v1399, %v1544
        %1546 = vdwg.mxu0
        %v1547 = vmax.f32 %v1459, 0.0
        %v1548 = vmax.f32 %v1508, 0.0
        %v1549 = vmax.f32 %v1461, 0.0
        %v1550 = vmax.f32 %v1510, 0.0
        %v1551 = vmax.f32 %v1464, 0.0
        %v1552 = vmax.f32 %v1513, 0.0
        %v1553 = vmax.f32 %v1466, 0.0
        %v1554 = vmax.f32 %v1515, 0.0
        %v1555 = vmax.f32 %v1469, 0.0
        %v1556 = vmax.f32 %v1518, 0.0
        %v1557 = vmax.f32 %v1471, 0.0
        %v1558 = vmax.f32 %v1520, 0.0
        %v1559 = vmax.f32 %v1474, 0.0
        %v1560 = vmax.f32 %v1523, 0.0
        %v1561 = vmax.f32 %v1476, 0.0
        %v1562 = vmax.f32 %v1525, 0.0
        %v1563 = vmax.f32 %v1479, 0.0
        %v1564 = vmax.f32 %v1528, 0.0
        %v1565 = vmax.f32 %v1481, 0.0
        %v1566 = vmax.f32 %v1530, 0.0
        %v1567 = vmax.f32 %v1484, 0.0
        %v1568 = vmax.f32 %v1533, 0.0
        %v1569 = vmax.f32 %v1486, 0.0
        %v1570 = vmax.f32 %v1535, 0.0
        %v1571 = vmax.f32 %v1489, 0.0
        %v1572 = vmax.f32 %v1538, 0.0
        %v1573 = vmax.f32 %v1491, 0.0
        %v1574 = vmax.f32 %v1540, 0.0
        %v1575 = vmax.f32 %v1494, 0.0
        %v1576 = vmax.f32 %v1543, 0.0
        %v1577 = vmax.f32 %v1496, 0.0
        %v1578 = vmax.f32 %v1545, 0.0
        %v1579 = vpack.c.bf16 %v1549, %v1547
        %v1580 = vpack.c.bf16 %v1550, %v1548
        %v1581 = vpack.c.bf16 %v1553, %v1551
        %v1582 = vpack.c.bf16 %v1554, %v1552
        %v1583 = vpack.c.bf16 %v1557, %v1555
        %v1584 = vpack.c.bf16 %v1558, %v1556
        %v1585 = vpack.c.bf16 %v1561, %v1559
        %v1586 = vpack.c.bf16 %v1562, %v1560
        %v1587 = vpack.c.bf16 %v1565, %v1563
        %v1588 = vpack.c.bf16 %v1566, %v1564
        %v1589 = vpack.c.bf16 %v1569, %v1567
        %v1590 = vpack.c.bf16 %v1570, %v1568
        %v1591 = vpack.c.bf16 %v1573, %v1571
        %v1592 = vpack.c.bf16 %v1574, %v1572
        %v1593 = vpack.c.bf16 %v1577, %v1575
        %v1594 = vpack.c.bf16 %v1578, %v1576
        %s1595 = scalar_lea.vmem %s5, 2
        %v1596 = vld [vmem:[%s1595] sm:$0x3]
        %s1597 = scalar_lea.vmem %s6, 4
        %v1598 = vld [vmem:[%s1597] sm:$0xf]
        %1600 = vset.pattern.permute.xlu0 0
        %1601 = vperm.xlu0 %1600, %v1598
        %v1602 = vpop.permute.xlu0 %1601
        %1604 = vmatpush.bf16.msra.mxu0 %v1593
        %1605 = vmatpush.bf16.msra.mxu0 %v1591
        %1606 = vmatpush.bf16.msra.mxu0 %v1589
        %1607 = vmatpush.bf16.msra.mxu0 %v1587
        %1608 = vmatpush.bf16.msra.mxu0 %v1585
        %1609 = vmatpush.bf16.msra.mxu0 %v1583
        %1610 = vmatpush.bf16.msra.mxu0 %v1581
        %1611 = vmatpush.bf16.msra.mxu0 %v1579
        %1612 = vmatmul.bf16.gmra.mxu0 %v1596
        %v1613 = vpop.f32.mrf.mxu0
        %v1614 = vadd.f32 %v1602, %v1613
        %v1615 = vpop.f32.mrf.mxu0
        %1616 = vdwg.mxu0
        %1617 = vmatpush.bf16.msra.mxu0 %v1594
        %1618 = vmatpush.bf16.msra.mxu0 %v1592
        %1619 = vmatpush.bf16.msra.mxu0 %v1590
        %1620 = vmatpush.bf16.msra.mxu0 %v1588
        %1621 = vmatpush.bf16.msra.mxu0 %v1586
        %1622 = vmatpush.bf16.msra.mxu0 %v1584
        %1623 = vmatpush.bf16.msra.mxu0 %v1582
        %1624 = vmatpush.bf16.msra.mxu0 %v1580
        %1625 = vmatmul.bf16.gmra.mxu0 %v1596
        %v1626 = vpop.f32.mrf.mxu0
        %v1627 = vadd.f32 %v1602, %v1626
        %v1628 = vpop.f32.mrf.mxu0
        %1629 = vdwg.mxu0
        %v1632 = vrot.slane %v1627, 4
        %v1633 = vsel %vm952, %v1614, %v1632
        %s1635 = scalar_lea.vmem %s268, 8 [#allocation2]
        %1636 = vst [vmem:[%s1635] sm:$0xff] %v1633
        %s1637 = scalar_lea.vmem %s1, 128
        %v1638 = vld [vmem:[%s1637] sm:$0xf]
        %v1639 = vld [vmem:[%s1637 + $0x4] sm:$0xf]
        %v1640 = vld [vmem:[%s1637 + $0x8] sm:$0xf]
        %v1641 = vld [vmem:[%s1637 + $0xc] sm:$0xf]
        %v1642 = vld [vmem:[%s1637 + $0x10] sm:$0xf]
        %v1643 = vld [vmem:[%s1637 + $0x14] sm:$0xf]
        %v1644 = vld [vmem:[%s1637 + $0x18] sm:$0xf]
        %v1645 = vld [vmem:[%s1637 + $0x1c] sm:$0xf]
        %v1646 = vld [vmem:[%s1637 + $0x20] sm:$0xf]
        %v1647 = vld [vmem:[%s1637 + $0x24] sm:$0xf]
        %v1648 = vld [vmem:[%s1637 + $0x28] sm:$0xf]
        %v1649 = vld [vmem:[%s1637 + $0x2c] sm:$0xf]
        %v1650 = vld [vmem:[%s1637 + $0x30] sm:$0xf]
        %v1651 = vld [vmem:[%s1637 + $0x34] sm:$0xf]
        %v1652 = vld [vmem:[%s1637 + $0x38] sm:$0xf]
        %v1653 = vld [vmem:[%s1637 + $0x3c] sm:$0xf]
        %s1654 = scalar_lea.vmem %s2, 256
        %v1655 = vld [vmem:[%s1654] sm:$0xff]
        %v1656 = vld [vmem:[%s1654 + $0x8] sm:$0xff]
        %v1657 = vld [vmem:[%s1654 + $0x10] sm:$0xff]
        %v1658 = vld [vmem:[%s1654 + $0x18] sm:$0xff]
        %v1659 = vld [vmem:[%s1654 + $0x20] sm:$0xff]
        %v1660 = vld [vmem:[%s1654 + $0x28] sm:$0xff]
        %v1661 = vld [vmem:[%s1654 + $0x30] sm:$0xff]
        %v1662 = vld [vmem:[%s1654 + $0x38] sm:$0xff]
        %v1663 = vld [vmem:[%s1654 + $0x40] sm:$0xff]
        %v1664 = vld [vmem:[%s1654 + $0x48] sm:$0xff]
        %v1665 = vld [vmem:[%s1654 + $0x50] sm:$0xff]
        %v1666 = vld [vmem:[%s1654 + $0x58] sm:$0xff]
        %v1667 = vld [vmem:[%s1654 + $0x60] sm:$0xff]
        %v1668 = vld [vmem:[%s1654 + $0x68] sm:$0xff]
        %v1669 = vld [vmem:[%s1654 + $0x70] sm:$0xff]
        %v1670 = vld [vmem:[%s1654 + $0x78] sm:$0xff]
        %1672 = vset.pattern.permute.xlu0 0
        %1673 = vperm.xlu0 %1672, %v1655
        %v1674 = vpop.permute.xlu0 %1673
        %1677 = vset.pattern.permute.xlu0 0
        %1678 = vperm.xlu0 %1677, %v1656
        %v1679 = vpop.permute.xlu0 %1678
        %1682 = vset.pattern.permute.xlu0 0
        %1683 = vperm.xlu0 %1682, %v1657
        %v1684 = vpop.permute.xlu0 %1683
        %1687 = vset.pattern.permute.xlu0 0
        %1688 = vperm.xlu0 %1687, %v1658
        %v1689 = vpop.permute.xlu0 %1688
        %1692 = vset.pattern.permute.xlu0 0
        %1693 = vperm.xlu0 %1692, %v1659
        %v1694 = vpop.permute.xlu0 %1693
        %1697 = vset.pattern.permute.xlu0 0
        %1698 = vperm.xlu0 %1697, %v1660
        %v1699 = vpop.permute.xlu0 %1698
        %1702 = vset.pattern.permute.xlu0 0
        %1703 = vperm.xlu0 %1702, %v1661
        %v1704 = vpop.permute.xlu0 %1703
        %1707 = vset.pattern.permute.xlu0 0
        %1708 = vperm.xlu0 %1707, %v1662
        %v1709 = vpop.permute.xlu0 %1708
        %1712 = vset.pattern.permute.xlu0 0
        %1713 = vperm.xlu0 %1712, %v1663
        %v1714 = vpop.permute.xlu0 %1713
        %1717 = vset.pattern.permute.xlu0 0
        %1718 = vperm.xlu0 %1717, %v1664
        %v1719 = vpop.permute.xlu0 %1718
        %1722 = vset.pattern.permute.xlu0 0
        %1723 = vperm.xlu0 %1722, %v1665
        %v1724 = vpop.permute.xlu0 %1723
        %1727 = vset.pattern.permute.xlu0 0
        %1728 = vperm.xlu0 %1727, %v1666
        %v1729 = vpop.permute.xlu0 %1728
        %1732 = vset.pattern.permute.xlu0 0
        %1733 = vperm.xlu0 %1732, %v1667
        %v1734 = vpop.permute.xlu0 %1733
        %1737 = vset.pattern.permute.xlu0 0
        %1738 = vperm.xlu0 %1737, %v1668
        %v1739 = vpop.permute.xlu0 %1738
        %1742 = vset.pattern.permute.xlu0 0
        %1743 = vperm.xlu0 %1742, %v1669
        %v1744 = vpop.permute.xlu0 %1743
        %1747 = vset.pattern.permute.xlu0 0
        %1748 = vperm.xlu0 %1747, %v1670
        %v1749 = vpop.permute.xlu0 %1748
        %v1767 = vunpack.c.l.b16 %v1638
        %v1768 = vunpack.c.l.b16 %v1639
        %v1769 = vunpack.c.l.b16 %v1640
        %v1770 = vunpack.c.l.b16 %v1641
        %v1771 = vunpack.c.l.b16 %v1642
        %v1772 = vunpack.c.l.b16 %v1643
        %v1773 = vunpack.c.l.b16 %v1644
        %v1774 = vunpack.c.l.b16 %v1645
        %v1775 = vunpack.c.l.b16 %v1646
        %v1776 = vunpack.c.l.b16 %v1647
        %v1777 = vunpack.c.l.b16 %v1648
        %v1778 = vunpack.c.l.b16 %v1649
        %v1779 = vunpack.c.l.b16 %v1650
        %v1780 = vunpack.c.l.b16 %v1651
        %v1781 = vunpack.c.l.b16 %v1652
        %v1782 = vunpack.c.l.b16 %v1653
        %v1783 = vpack.c.b16 %v1768, %v1767
        %v1784 = vpack.c.b16 %v1770, %v1769
        %v1785 = vpack.c.b16 %v1772, %v1771
        %v1786 = vpack.c.b16 %v1774, %v1773
        %v1787 = vpack.c.b16 %v1776, %v1775
        %v1788 = vpack.c.b16 %v1778, %v1777
        %v1789 = vpack.c.b16 %v1780, %v1779
        %v1790 = vpack.c.b16 %v1782, %v1781
        %1791 = vst [vmem:[#allocation1] ss:$4 sm:$0xff] %v277
        %v1792 = vld.sshfl [vmem:[#allocation1] sm:$0xff pattern:$0x73625140]
        %v1793 = vld.sshfl [vmem:[#allocation1 + $0x8] sm:$0xff pattern:$0x73625140]
        %v1795 = vsel %vm434, %v1783, 0
        %v1798 = vsel %vm434, %v1784, 0
        %v1801 = vsel %vm434, %v1785, 0
        %v1804 = vsel %vm434, %v1786, 0
        %v1807 = vsel %vm434, %v1787, 0
        %v1810 = vsel %vm434, %v1788, 0
        %v1813 = vsel %vm434, %v1789, 0
        %v1816 = vsel %vm434, %v1790, 0
        %v1818 = vsel %vm459, %v1792, 0
        %v1820 = vsel %vm459, %v1793, 0
        %1822 = vmatpush.bf16.msra.mxu0 0
        %1823 = vmatpush.bf16.msra.mxu0 0
        %1824 = vmatpush.bf16.msra.mxu0 0
        %1825 = vmatpush.bf16.msra.mxu0 0
        %1826 = vmatpush.bf16.msra.mxu0 0
        %1827 = vmatpush.bf16.msra.mxu0 0
        %1828 = vmatpush.bf16.msra.mxu0 0
        %1829 = vmatpush.bf16.msra.mxu0 %v1818
        %1830 = vmatmul.bf16.gmra.mxu0 %v1795
        %v1831 = vpop.f32.mrf.mxu0
        %v1832 = vadd.f32 %v1674, %v1831
        %v1833 = vpop.f32.mrf.mxu0
        %v1834 = vadd.f32 %v1679, %v1833
        %1835 = vmatmul.bf16.gmra.mxu0 %v1798
        %v1836 = vpop.f32.mrf.mxu0
        %v1837 = vadd.f32 %v1684, %v1836
        %v1838 = vpop.f32.mrf.mxu0
        %v1839 = vadd.f32 %v1689, %v1838
        %1840 = vmatmul.bf16.gmra.mxu0 %v1801
        %v1841 = vpop.f32.mrf.mxu0
        %v1842 = vadd.f32 %v1694, %v1841
        %v1843 = vpop.f32.mrf.mxu0
        %v1844 = vadd.f32 %v1699, %v1843
        %1845 = vmatmul.bf16.gmra.mxu0 %v1804
        %v1846 = vpop.f32.mrf.mxu0
        %v1847 = vadd.f32 %v1704, %v1846
        %v1848 = vpop.f32.mrf.mxu0
        %v1849 = vadd.f32 %v1709, %v1848
        %1850 = vmatmul.bf16.gmra.mxu0 %v1807
        %v1851 = vpop.f32.mrf.mxu0
        %v1852 = vadd.f32 %v1714, %v1851
        %v1853 = vpop.f32.mrf.mxu0
        %v1854 = vadd.f32 %v1719, %v1853
        %1855 = vmatmul.bf16.gmra.mxu0 %v1810
        %v1856 = vpop.f32.mrf.mxu0
        %v1857 = vadd.f32 %v1724, %v1856
        %v1858 = vpop.f32.mrf.mxu0
        %v1859 = vadd.f32 %v1729, %v1858
        %1860 = vmatmul.bf16.gmra.mxu0 %v1813
        %v1861 = vpop.f32.mrf.mxu0
        %v1862 = vadd.f32 %v1734, %v1861
        %v1863 = vpop.f32.mrf.mxu0
        %v1864 = vadd.f32 %v1739, %v1863
        %1865 = vmatmul.bf16.gmra.mxu0 %v1816
        %v1866 = vpop.f32.mrf.mxu0
        %v1867 = vadd.f32 %v1744, %v1866
        %v1868 = vpop.f32.mrf.mxu0
        %v1869 = vadd.f32 %v1749, %v1868
        %1870 = vdwg.mxu0
        %1871 = vmatpush.bf16.msra.mxu0 0
        %1872 = vmatpush.bf16.msra.mxu0 0
        %1873 = vmatpush.bf16.msra.mxu0 0
        %1874 = vmatpush.bf16.msra.mxu0 0
        %1875 = vmatpush.bf16.msra.mxu0 0
        %1876 = vmatpush.bf16.msra.mxu0 0
        %1877 = vmatpush.bf16.msra.mxu0 0
        %1878 = vmatpush.bf16.msra.mxu0 %v1820
        %1879 = vmatmul.bf16.gmra.mxu0 %v1795
        %v1880 = vpop.f32.mrf.mxu0
        %v1881 = vadd.f32 %v1674, %v1880
        %v1882 = vpop.f32.mrf.mxu0
        %v1883 = vadd.f32 %v1679, %v1882
        %1884 = vmatmul.bf16.gmra.mxu0 %v1798
        %v1885 = vpop.f32.mrf.mxu0
        %v1886 = vadd.f32 %v1684, %v1885
        %v1887 = vpop.f32.mrf.mxu0
        %v1888 = vadd.f32 %v1689, %v1887
        %1889 = vmatmul.bf16.gmra.mxu0 %v1801
        %v1890 = vpop.f32.mrf.mxu0
        %v1891 = vadd.f32 %v1694, %v1890
        %v1892 = vpop.f32.mrf.mxu0
        %v1893 = vadd.f32 %v1699, %v1892
        %1894 = vmatmul.bf16.gmra.mxu0 %v1804
        %v1895 = vpop.f32.mrf.mxu0
        %v1896 = vadd.f32 %v1704, %v1895
        %v1897 = vpop.f32.mrf.mxu0
        %v1898 = vadd.f32 %v1709, %v1897
        %1899 = vmatmul.bf16.gmra.mxu0 %v1807
        %v1900 = vpop.f32.mrf.mxu0
        %v1901 = vadd.f32 %v1714, %v1900
        %v1902 = vpop.f32.mrf.mxu0
        %v1903 = vadd.f32 %v1719, %v1902
        %1904 = vmatmul.bf16.gmra.mxu0 %v1810
        %v1905 = vpop.f32.mrf.mxu0
        %v1906 = vadd.f32 %v1724, %v1905
        %v1907 = vpop.f32.mrf.mxu0
        %v1908 = vadd.f32 %v1729, %v1907
        %1909 = vmatmul.bf16.gmra.mxu0 %v1813
        %v1910 = vpop.f32.mrf.mxu0
        %v1911 = vadd.f32 %v1734, %v1910
        %v1912 = vpop.f32.mrf.mxu0
        %v1913 = vadd.f32 %v1739, %v1912
        %1914 = vmatmul.bf16.gmra.mxu0 %v1816
        %v1915 = vpop.f32.mrf.mxu0
        %v1916 = vadd.f32 %v1744, %v1915
        %v1917 = vpop.f32.mrf.mxu0
        %v1918 = vadd.f32 %v1749, %v1917
        %1919 = vdwg.mxu0
        %v1920 = vmax.f32 %v1832, 0.0
        %v1921 = vmax.f32 %v1881, 0.0
        %v1922 = vmax.f32 %v1834, 0.0
        %v1923 = vmax.f32 %v1883, 0.0
        %v1924 = vmax.f32 %v1837, 0.0
        %v1925 = vmax.f32 %v1886, 0.0
        %v1926 = vmax.f32 %v1839, 0.0
        %v1927 = vmax.f32 %v1888, 0.0
        %v1928 = vmax.f32 %v1842, 0.0
        %v1929 = vmax.f32 %v1891, 0.0
        %v1930 = vmax.f32 %v1844, 0.0
        %v1931 = vmax.f32 %v1893, 0.0
        %v1932 = vmax.f32 %v1847, 0.0
        %v1933 = vmax.f32 %v1896, 0.0
        %v1934 = vmax.f32 %v1849, 0.0
        %v1935 = vmax.f32 %v1898, 0.0
        %v1936 = vmax.f32 %v1852, 0.0
        %v1937 = vmax.f32 %v1901, 0.0
        %v1938 = vmax.f32 %v1854, 0.0
        %v1939 = vmax.f32 %v1903, 0.0
        %v1940 = vmax.f32 %v1857, 0.0
        %v1941 = vmax.f32 %v1906, 0.0
        %v1942 = vmax.f32 %v1859, 0.0
        %v1943 = vmax.f32 %v1908, 0.0
        %v1944 = vmax.f32 %v1862, 0.0
        %v1945 = vmax.f32 %v1911, 0.0
        %v1946 = vmax.f32 %v1864, 0.0
        %v1947 = vmax.f32 %v1913, 0.0
        %v1948 = vmax.f32 %v1867, 0.0
        %v1949 = vmax.f32 %v1916, 0.0
        %v1950 = vmax.f32 %v1869, 0.0
        %v1951 = vmax.f32 %v1918, 0.0
        %v1952 = vpack.c.bf16 %v1922, %v1920
        %v1953 = vpack.c.bf16 %v1923, %v1921
        %v1954 = vpack.c.bf16 %v1926, %v1924
        %v1955 = vpack.c.bf16 %v1927, %v1925
        %v1956 = vpack.c.bf16 %v1930, %v1928
        %v1957 = vpack.c.bf16 %v1931, %v1929
        %v1958 = vpack.c.bf16 %v1934, %v1932
        %v1959 = vpack.c.bf16 %v1935, %v1933
        %v1960 = vpack.c.bf16 %v1938, %v1936
        %v1961 = vpack.c.bf16 %v1939, %v1937
        %v1962 = vpack.c.bf16 %v1942, %v1940
        %v1963 = vpack.c.bf16 %v1943, %v1941
        %v1964 = vpack.c.bf16 %v1946, %v1944
        %v1965 = vpack.c.bf16 %v1947, %v1945
        %v1966 = vpack.c.bf16 %v1950, %v1948
        %v1967 = vpack.c.bf16 %v1951, %v1949
        %s1968 = scalar_lea.vmem %s3, 128
        %v1969 = vld [vmem:[%s1968] sm:$0xf]
        %v1970 = vld [vmem:[%s1968 + $0x4] sm:$0xf]
        %v1971 = vld [vmem:[%s1968 + $0x8] sm:$0xf]
        %v1972 = vld [vmem:[%s1968 + $0xc] sm:$0xf]
        %v1973 = vld [vmem:[%s1968 + $0x10] sm:$0xf]
        %v1974 = vld [vmem:[%s1968 + $0x14] sm:$0xf]
        %v1975 = vld [vmem:[%s1968 + $0x18] sm:$0xf]
        %v1976 = vld [vmem:[%s1968 + $0x1c] sm:$0xf]
        %v1977 = vld [vmem:[%s1968 + $0x20] sm:$0xf]
        %v1978 = vld [vmem:[%s1968 + $0x24] sm:$0xf]
        %v1979 = vld [vmem:[%s1968 + $0x28] sm:$0xf]
        %v1980 = vld [vmem:[%s1968 + $0x2c] sm:$0xf]
        %v1981 = vld [vmem:[%s1968 + $0x30] sm:$0xf]
        %v1982 = vld [vmem:[%s1968 + $0x34] sm:$0xf]
        %v1983 = vld [vmem:[%s1968 + $0x38] sm:$0xf]
        %v1984 = vld [vmem:[%s1968 + $0x3c] sm:$0xf]
        %s1985 = scalar_lea.vmem %s4, 256
        %v1986 = vld [vmem:[%s1985] sm:$0xff]
        %v1987 = vld [vmem:[%s1985 + $0x8] sm:$0xff]
        %v1988 = vld [vmem:[%s1985 + $0x10] sm:$0xff]
        %v1989 = vld [vmem:[%s1985 + $0x18] sm:$0xff]
        %v1990 = vld [vmem:[%s1985 + $0x20] sm:$0xff]
        %v1991 = vld [vmem:[%s1985 + $0x28] sm:$0xff]
        %v1992 = vld [vmem:[%s1985 + $0x30] sm:$0xff]
        %v1993 = vld [vmem:[%s1985 + $0x38] sm:$0xff]
        %v1994 = vld [vmem:[%s1985 + $0x40] sm:$0xff]
        %v1995 = vld [vmem:[%s1985 + $0x48] sm:$0xff]
        %v1996 = vld [vmem:[%s1985 + $0x50] sm:$0xff]
        %v1997 = vld [vmem:[%s1985 + $0x58] sm:$0xff]
        %v1998 = vld [vmem:[%s1985 + $0x60] sm:$0xff]
        %v1999 = vld [vmem:[%s1985 + $0x68] sm:$0xff]
        %v2000 = vld [vmem:[%s1985 + $0x70] sm:$0xff]
        %v2001 = vld [vmem:[%s1985 + $0x78] sm:$0xff]
        %2003 = vset.pattern.permute.xlu0 0
        %2004 = vperm.xlu0 %2003, %v1986
        %v2005 = vpop.permute.xlu0 %2004
        %2008 = vset.pattern.permute.xlu0 0
        %2009 = vperm.xlu0 %2008, %v1987
        %v2010 = vpop.permute.xlu0 %2009
        %2013 = vset.pattern.permute.xlu0 0
        %2014 = vperm.xlu0 %2013, %v1988
        %v2015 = vpop.permute.xlu0 %2014
        %2018 = vset.pattern.permute.xlu0 0
        %2019 = vperm.xlu0 %2018, %v1989
        %v2020 = vpop.permute.xlu0 %2019
        %2023 = vset.pattern.permute.xlu0 0
        %2024 = vperm.xlu0 %2023, %v1990
        %v2025 = vpop.permute.xlu0 %2024
        %2028 = vset.pattern.permute.xlu0 0
        %2029 = vperm.xlu0 %2028, %v1991
        %v2030 = vpop.permute.xlu0 %2029
        %2033 = vset.pattern.permute.xlu0 0
        %2034 = vperm.xlu0 %2033, %v1992
        %v2035 = vpop.permute.xlu0 %2034
        %2038 = vset.pattern.permute.xlu0 0
        %2039 = vperm.xlu0 %2038, %v1993
        %v2040 = vpop.permute.xlu0 %2039
        %2043 = vset.pattern.permute.xlu0 0
        %2044 = vperm.xlu0 %2043, %v1994
        %v2045 = vpop.permute.xlu0 %2044
        %2048 = vset.pattern.permute.xlu0 0
        %2049 = vperm.xlu0 %2048, %v1995
        %v2050 = vpop.permute.xlu0 %2049
        %2053 = vset.pattern.permute.xlu0 0
        %2054 = vperm.xlu0 %2053, %v1996
        %v2055 = vpop.permute.xlu0 %2054
        %2058 = vset.pattern.permute.xlu0 0
        %2059 = vperm.xlu0 %2058, %v1997
        %v2060 = vpop.permute.xlu0 %2059
        %2063 = vset.pattern.permute.xlu0 0
        %2064 = vperm.xlu0 %2063, %v1998
        %v2065 = vpop.permute.xlu0 %2064
        %2068 = vset.pattern.permute.xlu0 0
        %2069 = vperm.xlu0 %2068, %v1999
        %v2070 = vpop.permute.xlu0 %2069
        %2073 = vset.pattern.permute.xlu0 0
        %2074 = vperm.xlu0 %2073, %v2000
        %v2075 = vpop.permute.xlu0 %2074
        %2078 = vset.pattern.permute.xlu0 0
        %2079 = vperm.xlu0 %2078, %v2001
        %v2080 = vpop.permute.xlu0 %2079
        %v2098 = vunpack.c.l.b16 %v1969
        %v2099 = vunpack.c.l.b16 %v1970
        %v2100 = vunpack.c.l.b16 %v1971
        %v2101 = vunpack.c.l.b16 %v1972
        %v2102 = vunpack.c.l.b16 %v1973
        %v2103 = vunpack.c.l.b16 %v1974
        %v2104 = vunpack.c.l.b16 %v1975
        %v2105 = vunpack.c.l.b16 %v1976
        %v2106 = vunpack.c.l.b16 %v1977
        %v2107 = vunpack.c.l.b16 %v1978
        %v2108 = vunpack.c.l.b16 %v1979
        %v2109 = vunpack.c.l.b16 %v1980
        %v2110 = vunpack.c.l.b16 %v1981
        %v2111 = vunpack.c.l.b16 %v1982
        %v2112 = vunpack.c.l.b16 %v1983
        %v2113 = vunpack.c.l.b16 %v1984
        %v2114 = vpack.c.b16 %v2099, %v2098
        %v2115 = vpack.c.b16 %v2101, %v2100
        %v2116 = vpack.c.b16 %v2103, %v2102
        %v2117 = vpack.c.b16 %v2105, %v2104
        %v2118 = vpack.c.b16 %v2107, %v2106
        %v2119 = vpack.c.b16 %v2109, %v2108
        %v2120 = vpack.c.b16 %v2111, %v2110
        %v2121 = vpack.c.b16 %v2113, %v2112
        %2130 = vmatpush.bf16.msra.mxu0 %v1966
        %2131 = vmatpush.bf16.msra.mxu0 %v1964
        %2132 = vmatpush.bf16.msra.mxu0 %v1962
        %2133 = vmatpush.bf16.msra.mxu0 %v1960
        %2134 = vmatpush.bf16.msra.mxu0 %v1958
        %2135 = vmatpush.bf16.msra.mxu0 %v1956
        %2136 = vmatpush.bf16.msra.mxu0 %v1954
        %2137 = vmatpush.bf16.msra.mxu0 %v1952
        %2138 = vmatmul.bf16.gmra.mxu0 %v2114
        %v2139 = vpop.f32.mrf.mxu0
        %v2140 = vadd.f32 %v2005, %v2139
        %v2141 = vpop.f32.mrf.mxu0
        %v2142 = vadd.f32 %v2010, %v2141
        %2143 = vmatmul.bf16.gmra.mxu0 %v2115
        %v2144 = vpop.f32.mrf.mxu0
        %v2145 = vadd.f32 %v2015, %v2144
        %v2146 = vpop.f32.mrf.mxu0
        %v2147 = vadd.f32 %v2020, %v2146
        %2148 = vmatmul.bf16.gmra.mxu0 %v2116
        %v2149 = vpop.f32.mrf.mxu0
        %v2150 = vadd.f32 %v2025, %v2149
        %v2151 = vpop.f32.mrf.mxu0
        %v2152 = vadd.f32 %v2030, %v2151
        %2153 = vmatmul.bf16.gmra.mxu0 %v2117
        %v2154 = vpop.f32.mrf.mxu0
        %v2155 = vadd.f32 %v2035, %v2154
        %v2156 = vpop.f32.mrf.mxu0
        %v2157 = vadd.f32 %v2040, %v2156
        %2158 = vmatmul.bf16.gmra.mxu0 %v2118
        %v2159 = vpop.f32.mrf.mxu0
        %v2160 = vadd.f32 %v2045, %v2159
        %v2161 = vpop.f32.mrf.mxu0
        %v2162 = vadd.f32 %v2050, %v2161
        %2163 = vmatmul.bf16.gmra.mxu0 %v2119
        %v2164 = vpop.f32.mrf.mxu0
        %v2165 = vadd.f32 %v2055, %v2164
        %v2166 = vpop.f32.mrf.mxu0
        %v2167 = vadd.f32 %v2060, %v2166
        %2168 = vmatmul.bf16.gmra.mxu0 %v2120
        %v2169 = vpop.f32.mrf.mxu0
        %v2170 = vadd.f32 %v2065, %v2169
        %v2171 = vpop.f32.mrf.mxu0
        %v2172 = vadd.f32 %v2070, %v2171
        %2173 = vmatmul.bf16.gmra.mxu0 %v2121
        %v2174 = vpop.f32.mrf.mxu0
        %v2175 = vadd.f32 %v2075, %v2174
        %v2176 = vpop.f32.mrf.mxu0
        %v2177 = vadd.f32 %v2080, %v2176
        %2178 = vdwg.mxu0
        %2179 = vmatpush.bf16.msra.mxu0 %v1967
        %2180 = vmatpush.bf16.msra.mxu0 %v1965
        %2181 = vmatpush.bf16.msra.mxu0 %v1963
        %2182 = vmatpush.bf16.msra.mxu0 %v1961
        %2183 = vmatpush.bf16.msra.mxu0 %v1959
        %2184 = vmatpush.bf16.msra.mxu0 %v1957
        %2185 = vmatpush.bf16.msra.mxu0 %v1955
        %2186 = vmatpush.bf16.msra.mxu0 %v1953
        %2187 = vmatmul.bf16.gmra.mxu0 %v2114
        %v2188 = vpop.f32.mrf.mxu0
        %v2189 = vadd.f32 %v2005, %v2188
        %v2190 = vpop.f32.mrf.mxu0
        %v2191 = vadd.f32 %v2010, %v2190
        %2192 = vmatmul.bf16.gmra.mxu0 %v2115
        %v2193 = vpop.f32.mrf.mxu0
        %v2194 = vadd.f32 %v2015, %v2193
        %v2195 = vpop.f32.mrf.mxu0
        %v2196 = vadd.f32 %v2020, %v2195
        %2197 = vmatmul.bf16.gmra.mxu0 %v2116
        %v2198 = vpop.f32.mrf.mxu0
        %v2199 = vadd.f32 %v2025, %v2198
        %v2200 = vpop.f32.mrf.mxu0
        %v2201 = vadd.f32 %v2030, %v2200
        %2202 = vmatmul.bf16.gmra.mxu0 %v2117
        %v2203 = vpop.f32.mrf.mxu0
        %v2204 = vadd.f32 %v2035, %v2203
        %v2205 = vpop.f32.mrf.mxu0
        %v2206 = vadd.f32 %v2040, %v2205
        %2207 = vmatmul.bf16.gmra.mxu0 %v2118
        %v2208 = vpop.f32.mrf.mxu0
        %v2209 = vadd.f32 %v2045, %v2208
        %v2210 = vpop.f32.mrf.mxu0
        %v2211 = vadd.f32 %v2050, %v2210
        %2212 = vmatmul.bf16.gmra.mxu0 %v2119
        %v2213 = vpop.f32.mrf.mxu0
        %v2214 = vadd.f32 %v2055, %v2213
        %v2215 = vpop.f32.mrf.mxu0
        %v2216 = vadd.f32 %v2060, %v2215
        %2217 = vmatmul.bf16.gmra.mxu0 %v2120
        %v2218 = vpop.f32.mrf.mxu0
        %v2219 = vadd.f32 %v2065, %v2218
        %v2220 = vpop.f32.mrf.mxu0
        %v2221 = vadd.f32 %v2070, %v2220
        %2222 = vmatmul.bf16.gmra.mxu0 %v2121
        %v2223 = vpop.f32.mrf.mxu0
        %v2224 = vadd.f32 %v2075, %v2223
        %v2225 = vpop.f32.mrf.mxu0
        %v2226 = vadd.f32 %v2080, %v2225
        %2227 = vdwg.mxu0
        %v2228 = vmax.f32 %v2140, 0.0
        %v2229 = vmax.f32 %v2189, 0.0
        %v2230 = vmax.f32 %v2142, 0.0
        %v2231 = vmax.f32 %v2191, 0.0
        %v2232 = vmax.f32 %v2145, 0.0
        %v2233 = vmax.f32 %v2194, 0.0
        %v2234 = vmax.f32 %v2147, 0.0
        %v2235 = vmax.f32 %v2196, 0.0
        %v2236 = vmax.f32 %v2150, 0.0
        %v2237 = vmax.f32 %v2199, 0.0
        %v2238 = vmax.f32 %v2152, 0.0
        %v2239 = vmax.f32 %v2201, 0.0
        %v2240 = vmax.f32 %v2155, 0.0
        %v2241 = vmax.f32 %v2204, 0.0
        %v2242 = vmax.f32 %v2157, 0.0
        %v2243 = vmax.f32 %v2206, 0.0
        %v2244 = vmax.f32 %v2160, 0.0
        %v2245 = vmax.f32 %v2209, 0.0
        %v2246 = vmax.f32 %v2162, 0.0
        %v2247 = vmax.f32 %v2211, 0.0
        %v2248 = vmax.f32 %v2165, 0.0
        %v2249 = vmax.f32 %v2214, 0.0
        %v2250 = vmax.f32 %v2167, 0.0
        %v2251 = vmax.f32 %v2216, 0.0
        %v2252 = vmax.f32 %v2170, 0.0
        %v2253 = vmax.f32 %v2219, 0.0
        %v2254 = vmax.f32 %v2172, 0.0
        %v2255 = vmax.f32 %v2221, 0.0
        %v2256 = vmax.f32 %v2175, 0.0
        %v2257 = vmax.f32 %v2224, 0.0
        %v2258 = vmax.f32 %v2177, 0.0
        %v2259 = vmax.f32 %v2226, 0.0
        %v2260 = vpack.c.bf16 %v2230, %v2228
        %v2261 = vpack.c.bf16 %v2231, %v2229
        %v2262 = vpack.c.bf16 %v2234, %v2232
        %v2263 = vpack.c.bf16 %v2235, %v2233
        %v2264 = vpack.c.bf16 %v2238, %v2236
        %v2265 = vpack.c.bf16 %v2239, %v2237
        %v2266 = vpack.c.bf16 %v2242, %v2240
        %v2267 = vpack.c.bf16 %v2243, %v2241
        %v2268 = vpack.c.bf16 %v2246, %v2244
        %v2269 = vpack.c.bf16 %v2247, %v2245
        %v2270 = vpack.c.bf16 %v2250, %v2248
        %v2271 = vpack.c.bf16 %v2251, %v2249
        %v2272 = vpack.c.bf16 %v2254, %v2252
        %v2273 = vpack.c.bf16 %v2255, %v2253
        %v2274 = vpack.c.bf16 %v2258, %v2256
        %v2275 = vpack.c.bf16 %v2259, %v2257
        %s2276 = scalar_lea.vmem %s5, 4
        %v2277 = vld [vmem:[%s2276] sm:$0x3]
        %s2278 = scalar_lea.vmem %s6, 8
        %v2279 = vld [vmem:[%s2278] sm:$0xf]
        %2281 = vset.pattern.permute.xlu0 0
        %2282 = vperm.xlu0 %2281, %v2279
        %v2283 = vpop.permute.xlu0 %2282
        %2285 = vmatpush.bf16.msra.mxu0 %v2274
        %2286 = vmatpush.bf16.msra.mxu0 %v2272
        %2287 = vmatpush.bf16.msra.mxu0 %v2270
        %2288 = vmatpush.bf16.msra.mxu0 %v2268
        %2289 = vmatpush.bf16.msra.mxu0 %v2266
        %2290 = vmatpush.bf16.msra.mxu0 %v2264
        %2291 = vmatpush.bf16.msra.mxu0 %v2262
        %2292 = vmatpush.bf16.msra.mxu0 %v2260
        %2293 = vmatmul.bf16.gmra.mxu0 %v2277
        %v2294 = vpop.f32.mrf.mxu0
        %v2295 = vadd.f32 %v2283, %v2294
        %v2296 = vpop.f32.mrf.mxu0
        %2297 = vdwg.mxu0
        %2298 = vmatpush.bf16.msra.mxu0 %v2275
        %2299 = vmatpush.bf16.msra.mxu0 %v2273
        %2300 = vmatpush.bf16.msra.mxu0 %v2271
        %2301 = vmatpush.bf16.msra.mxu0 %v2269
        %2302 = vmatpush.bf16.msra.mxu0 %v2267
        %2303 = vmatpush.bf16.msra.mxu0 %v2265
        %2304 = vmatpush.bf16.msra.mxu0 %v2263
        %2305 = vmatpush.bf16.msra.mxu0 %v2261
        %2306 = vmatmul.bf16.gmra.mxu0 %v2277
        %v2307 = vpop.f32.mrf.mxu0
        %v2308 = vadd.f32 %v2283, %v2307
        %v2309 = vpop.f32.mrf.mxu0
        %2310 = vdwg.mxu0
        %v2313 = vrot.slane %v2308, 4
        %v2314 = vsel %vm952, %v2295, %v2313
        %s2316 = scalar_lea.vmem %s268, 16 [#allocation2]
        %2317 = vst [vmem:[%s2316] sm:$0xff] %v2314
        %s2318 = sand.u32 %s178, 1
        %s2319 = sand.u32 %s178, 1
        %s2320 = smul.addr %s2319, 24
        %s2321 = scalar_lea.vmem [#allocation2], %s2320
        // Predicated region
        $region49: #{deconv2d_pallas.1} parent=47 // pred_check
          %p2322 = pneg %p188
        $region50: #{deconv2d_pallas.1} parent=47 // pred_check_branch
          %2324 = sbr.rel (%p2322) target = $region52
        $region51: #{deconv2d_pallas.1} parent=47 // pred_region
          %s2325 = smul.u32 2, %s18
          %s2326 = smul.addr %s2325, 4
          %s2327 = scalar_lea.vmem %s7, %s2326
          // Predicated region
          $region53: #{deconv2d_pallas.1} parent=51 // pred_check
            _
          $region54: #{deconv2d_pallas.1} parent=51 // pred_check_branch
            %2329 = sbr.rel (0) target = $region56
          $region55: #{deconv2d_pallas.1} parent=51 // pred_region
            // Predicated region
            $region57: #{deconv2d_pallas.1} parent=55 // pred_check
              _
            $region58: #{deconv2d_pallas.1} parent=55 // pred_check_branch
              %2331 = sbr.rel (0) target = $region60
            $region59: #{deconv2d_pallas.1} parent=55 // pred_region
              // Predicated region
              $region72: #{deconv2d_pallas.1} parent=59 // pred_check
                _
              $region73: #{deconv2d_pallas.1} parent=59 // pred_check_branch
                %2351 = sbr.rel (0) target = $region75
              $region74: #{deconv2d_pallas.1} parent=59 // pred_region
                loop: start=0, step=1, limit=1
                $region76: #{deconv2d_pallas.1} parent=74 // loop_pre_header
                  _
                $region77: #{deconv2d_pallas.1} parent=74 // loop_header
                  %s2353 = sphi 0, %s2357
                  %p2354 = scmp.ge.s32.totalorder %s2353, 1
                  %s2358 = sphi %s2321, %s2321
                  %s2359 = sphi %s2327, %s2327
                $region78: #{deconv2d_pallas.1} parent=74 // loop_header_branch
                  %2356 = sbr.rel (%p2354) target = $region82
                $region79: #{deconv2d_pallas.1} parent=74 // loop_body
                  %v2360 = vld [vmem:[%s2358] sm:$0xff]
                  %2361 = vst [vmem:[%s2359] sm:$0xff] %v2360
                  %v2362 = vld [vmem:[%s2358 + $0x8] sm:$0xff]
                  %2363 = vst [vmem:[%s2359 + $0x10] sm:$0xff] %v2362
                  %v2364 = vld [vmem:[%s2358 + $0x10] sm:$0xff]
                  %2365 = vst [vmem:[%s2359 + $0x20] sm:$0xff] %v2364
                $region80: #{deconv2d_pallas.1} parent=74 // loop_footer
                  %s2357 = sadd.s32 1, %s2353
                $region81: #{deconv2d_pallas.1} parent=74 // loop_footer_branch
                  %2352 = sbr.rel target = $region77
                $region82: #{deconv2d_pallas.1} parent=74 // loop_exit
                  _
              $region75: #{deconv2d_pallas.1} parent=59 // pred_fallthru
                _
              // Predicated region
              $region83: #{deconv2d_pallas.1} parent=59 // pred_check
                _
              $region84: #{deconv2d_pallas.1} parent=59 // pred_check_branch
                %2367 = sbr.rel target = $region86
              $region85: #{deconv2d_pallas.1} parent=59 // pred_region
                _
              $region86: #{deconv2d_pallas.1} parent=59 // pred_fallthru
                _
            $region60: #{deconv2d_pallas.1} parent=55 // pred_fallthru
              _
            // Predicated region
            $region61: #{deconv2d_pallas.1} parent=55 // pred_check
              _
            $region62: #{deconv2d_pallas.1} parent=55 // pred_check_branch
              %2333 = sbr.rel target = $region64
            $region63: #{deconv2d_pallas.1} parent=55 // pred_region
              %s2335 = ssub.s32 256, 1
              loop: start=0, step=1, limit=1
              $region65: #{deconv2d_pallas.1} parent=63 // loop_pre_header
                _
              $region66: #{deconv2d_pallas.1} parent=63 // loop_header
                %s2337 = sphi 0, %s2341
                %p2338 = scmp.ge.s32.totalorder %s2337, 1
                %s2342 = sphi %s2321, %s2321
                %s2343 = sphi %s2327, %s2327
              $region67: #{deconv2d_pallas.1} parent=63 // loop_header_branch
                %2340 = sbr.rel (%p2338) target = $region71
              $region68: #{deconv2d_pallas.1} parent=63 // loop_body
                %v2344 = vld [vmem:[%s2342] sm:%s2335]
                %2345 = vst [vmem:[%s2343] sm:%s2335] %v2344
                %v2346 = vld [vmem:[%s2342 + $0x8] sm:%s2335]
                %2347 = vst [vmem:[%s2343 + $0x10] sm:%s2335] %v2346
                %v2348 = vld [vmem:[%s2342 + $0x10] sm:%s2335]
                %2349 = vst [vmem:[%s2343 + $0x20] sm:%s2335] %v2348
              $region69: #{deconv2d_pallas.1} parent=63 // loop_footer
                %s2341 = sadd.s32 1, %s2337
              $region70: #{deconv2d_pallas.1} parent=63 // loop_footer_branch
                %2336 = sbr.rel target = $region66
              $region71: #{deconv2d_pallas.1} parent=63 // loop_exit
                _
            $region64: #{deconv2d_pallas.1} parent=55 // pred_fallthru
              _
          $region56: #{deconv2d_pallas.1} parent=51 // pred_fallthru
            _
          %2368 = vnop
        $region52: #{deconv2d_pallas.1} parent=47 // pred_fallthru
          _
      $region48: #{deconv2d_pallas.1} parent=5 // pred_fallthru
        _
      %p2369 = scmp.le.s32.totalorder 2, %s13
      // Predicated region
      $region87: #{deconv2d_pallas.1} parent=5 // pred_check
        %p2370 = pneg %p2369
      $region88: #{deconv2d_pallas.1} parent=5 // pred_check_branch
        %2372 = sbr.rel (%p2370) target = $region90
      $region89: #{deconv2d_pallas.1} parent=5 // pred_region
        %s2373 = ssub.s32 %s13, 2
        // Predicated region
        $region91: #{deconv2d_pallas.1} parent=89 // pred_check
          %p2374 = pneg %p194
        $region92: #{deconv2d_pallas.1} parent=89 // pred_check_branch
          %2376 = sbr.rel (%p2374) target = $region94
        $region93: #{deconv2d_pallas.1} parent=89 // pred_region
          %s2377 = sand.u32 %s179, 1
          %s2378 = sand.u32 %s179, 1
          %s2379 = smul.addr %s2378, 24
          %s2380 = scalar_lea.vmem [#allocation2], %s2379
        $region94: #{deconv2d_pallas.1} parent=89 // pred_fallthru
          _
      $region90: #{deconv2d_pallas.1} parent=5 // pred_fallthru
        _
    $region6: #{deconv2d_pallas.1} parent=1 // loop_footer
      %s17 = sadd.s32 1, %s13
    $region7: #{deconv2d_pallas.1} parent=1 // loop_footer_branch
      %12 = sbr.rel target = $region3
    $region8: #{deconv2d_pallas.1} parent=1 // loop_exit
      _

</llo_original>
